<compile_context>
chip_gen: v6e
topology: v6e:2x2x1
jax: 0.10.0
libtpu: 0.0.40
codegen_flags: <defaults>
</compile_context>

<pallas_src>
import functools

import jax
import jax.numpy as jnp
import numpy as np
from jax.experimental import pallas as pl
from jax.experimental.pallas import tpu as pltpu


# ---------------------------------------------------------------------------
# Fused Pallas kernel: ONE grid step == the full forward pass (all batches)
# ---------------------------------------------------------------------------
def fused_cross_attn_kernel(x_ref, enc_ref, mask_ref,
                            qw_ref, qb_ref, kw_ref, kb_ref, vw_ref, vb_ref,
                            pw_ref, pb_ref, o_ref,
                            *, batch, lq, lk, n_head, head_dim, scale):
    # x_ref:    (B*Lq, E)   decoder hidden states, batch-flattened
    # enc_ref:  (B*Lk, E)   encoder hidden states, batch-flattened
    # mask_ref: (B, 1, Lk)  int32, 1 = keep, 0 = mask out
    # qw_ref:   (E, E)   qb_ref: (1, E)       (weights pre-transposed to (in, out))
    # kw_ref:   (E, E)   kb_ref: (1, E)
    # vw_ref:   (E, E)   vb_ref: (1, E)
    # pw_ref:   (E, E)   pb_ref: (1, E)
    # o_ref:    (B*Lq, E)
    x = x_ref[...]
    enc = enc_ref[...]

    # Fused projections over ALL batches at once (single matmuls, stay in VMEM).
    q = jnp.dot(x, qw_ref[...], preferred_element_type=jnp.float32) + qb_ref[...]    # (B*Lq, E)
    k = jnp.dot(enc, kw_ref[...], preferred_element_type=jnp.float32) + kb_ref[...]  # (B*Lk, E)
    v = jnp.dot(enc, vw_ref[...], preferred_element_type=jnp.float32) + vb_ref[...]  # (B*Lk, E)

    neg = jnp.float32(-10000.0)

    for b in range(batch):                      # static -> fully unrolled
        q_b = q[b * lq:(b + 1) * lq, :]         # (Lq, E)  sublane-aligned row slices
        k_b = k[b * lk:(b + 1) * lk, :]         # (Lk, E)
        v_b = v[b * lk:(b + 1) * lk, :]         # (Lk, E)

        # Hoist the mask broadcast out of the head loop (reused by every head).
        keep = jnp.broadcast_to(mask_ref[b] != 0, (lq, lk))   # (Lq, Lk) bool

        acc = None
        for h in range(n_head):                 # static -> fully unrolled
            lo = h * head_dim
            qh = q_b[:, lo:lo + head_dim]       # (Lq, D)
            kh = k_b[:, lo:lo + head_dim]       # (Lk, D)
            vh = v_b[:, lo:lo + head_dim]       # (Lk, D)

            # scores = qh @ kh^T / sqrt(D), masked with exact -10000 semantics
            s = jax.lax.dot_general(qh, kh, (((1,), (1,)), ((), ())),
                                    preferred_element_type=jnp.float32) * scale  # (Lq, Lk)
            s = jnp.where(keep, s, neg)

            # numerically stable softmax; EUP reciprocal instead of VALU divide
            m = jnp.max(s, axis=-1, keepdims=True)
            p = jnp.exp(s - m)
            inv = pl.reciprocal(jnp.sum(p, axis=-1, keepdims=True), approx=True)
            w = p * inv

            ctx = jnp.dot(w, vh, preferred_element_type=jnp.float32)             # (Lq, D)

            # Accumulate the output projection per head: row slices of pw at
            # multiples of head_dim are sublane-aligned (no lane concat needed).
            contrib = jnp.dot(ctx, pw_ref[lo:lo + head_dim, :],
                              preferred_element_type=jnp.float32)                # (Lq, E)
            acc = contrib if acc is None else acc + contrib

        out = acc + pb_ref[...]
        o_ref[b * lq:(b + 1) * lq, :] = out.astype(o_ref.dtype)


# ---------------------------------------------------------------------------
# Parameter preparation (done ONCE, hoisted out of the forward path)
# ---------------------------------------------------------------------------
def prepare_params(params):
    """Transpose PyTorch (out, in) weights to (in, out), split KV, reshape biases to 2D."""
    E = params["q_w"].shape[0]
    kv_w, kv_b = params["kv_w"], params["kv_b"]
    return {
        "q_wt":   jnp.transpose(params["q_w"]),        # (E, E)
        "q_b":    params["q_b"].reshape(1, E),
        "k_wt":   jnp.transpose(kv_w[:E, :]),          # (E, E)  first E outputs -> key
        "k_b":    kv_b[:E].reshape(1, E),
        "v_wt":   jnp.transpose(kv_w[E:, :]),          # (E, E)  last E outputs -> value
        "v_b":    kv_b[E:].reshape(1, E),
        "proj_wt": jnp.transpose(params["proj_w"]),    # (E, E)
        "proj_b":  params["proj_b"].reshape(1, E),
    }


# ---------------------------------------------------------------------------
# CrossAttention forward (transformer_multihead): a single pallas_call, one step
# ---------------------------------------------------------------------------
@functools.partial(jax.jit, static_argnames=("n_head",))
def cross_attention_forward(prepped, hidden_states, encoder_hidden_states,
                            encoder_attention_mask, *, n_head):
    B, Lq, E = hidden_states.shape
    Lk = encoder_hidden_states.shape[1]
    head_dim = E // n_head
    scale = 1.0 / float(head_dim) ** 0.5

    # Batch-flattened activations (free reshapes); mask stays (B, 1, Lk).
    x2 = hidden_states.reshape(B * Lq, E)
    enc2 = encoder_hidden_states.reshape(B * Lk, E)
    mask3 = encoder_attention_mask.reshape(B, 1, Lk).astype(jnp.int32)

    kernel = functools.partial(fused_cross_attn_kernel,
                               batch=B, lq=Lq, lk=Lk,
                               n_head=n_head, head_dim=head_dim, scale=scale)
    full2 = lambda i: (0, 0)   # every array is a single whole-array block

    out2 = pl.pallas_call(
        kernel,
        out_shape=jax.ShapeDtypeStruct((B * Lq, E), jnp.float32),
        grid=(1,),                                   # one step: no per-step overhead x B
        in_specs=[
            pl.BlockSpec((B * Lq, E), full2),        # hidden_states (flattened)
            pl.BlockSpec((B * Lk, E), full2),        # encoder_hidden_states (flattened)
            pl.BlockSpec((B, 1, Lk), lambda i: (0, 0, 0)),  # mask (resident, one DMA)
            pl.BlockSpec((E, E), full2),             # q_wt
            pl.BlockSpec((1, E), full2),             # q_b
            pl.BlockSpec((E, E), full2),             # k_wt
            pl.BlockSpec((1, E), full2),             # k_b
            pl.BlockSpec((E, E), full2),             # v_wt
            pl.BlockSpec((1, E), full2),             # v_b
            pl.BlockSpec((E, E), full2),             # proj_wt
            pl.BlockSpec((1, E), full2),             # proj_b
        ],
        out_specs=pl.BlockSpec((B * Lq, E), full2),
    )(x2, enc2, mask3,
      prepped["q_wt"], prepped["q_b"],
      prepped["k_wt"], prepped["k_b"],
      prepped["v_wt"], prepped["v_b"],
      prepped["proj_wt"], prepped["proj_b"])

    return out2.reshape(B, Lq, E)


# ---------------------------------------------------------------------------
# pure-JAX reference (for correctness check) -- operates on the raw params
# ---------------------------------------------------------------------------
def reference_forward(params, hidden_states, encoder_hidden_states,
                      encoder_attention_mask, *, n_head):
    B, Lq, E = hidden_states.shape
    Lk = encoder_hidden_states.shape[1]
    D = E // n_head
    q = hidden_states @ params["q_w"].T + params["q_b"]
    kv = encoder_hidden_states @ params["kv_w"].T + params["kv_b"]
    key, value = kv[..., :E], kv[..., E:]
    qh = q.reshape(B, Lq, n_head, D).transpose(0, 2, 1, 3)
    kh = key.reshape(B, Lk, n_head, D).transpose(0, 2, 1, 3)
    vh = value.reshape(B, Lk, n_head, D).transpose(0, 2, 1, 3)
    scores = jnp.einsum("bhqd,bhkd->bhqk", qh, kh) / float(D) ** 0.5
    mask = encoder_attention_mask[:, None, None, :].astype(bool)
    scores = jnp.where(mask, scores, jnp.float32(-10000.0))
    w = jax.nn.softmax(scores, axis=-1)
    out = jnp.einsum("bhqk,bhkd->bhqd", w, vh)
    out = out.transpose(0, 2, 1, 3).reshape(B, Lq, E)
    return out @ params["proj_w"].T + params["proj_b"]


# ---------------------------------------------------------------------------
if __name__ == "__main__":
    # config: n_embd=32, n_head=4, attn_type='transformer_multihead'
    B, Lq, Lk, n_embd, n_head = 2, 8, 8, 32, 4

    key = jax.random.PRNGKey(0)
    ks = jax.random.split(key, 8)
    init = lambda k, shape: (0.02 * jax.random.normal(k, shape)).astype(jnp.float32)

    params = {
        "q_w":    init(ks[0], (n_embd, n_embd)),        # nn.Linear(n_embd, n_embd)
        "q_b":    jnp.zeros((n_embd,), jnp.float32),
        "kv_w":   init(ks[1], (2 * n_embd, n_embd)),    # nn.Linear(n_embd, 2*n_embd)
        "kv_b":   jnp.zeros((2 * n_embd,), jnp.float32),
        "proj_w": init(ks[2], (n_embd, n_embd)),        # nn.Linear(n_embd, n_embd)
        "proj_b": jnp.zeros((n_embd,), jnp.float32),
    }

    hidden_states = init(ks[3], (B, Lq, n_embd)) * 50.0
    encoder_hidden_states = init(ks[4], (B, Lk, n_embd)) * 50.0
    # mask: keep first 6 encoder positions, drop last 2 (deterministic)
    encoder_attention_mask = jnp.concatenate(
        [jnp.ones((B, Lk - 2), jnp.int32), jnp.zeros((B, 2), jnp.int32)], axis=-1)

    # one-time parameter prep (weight transposes / KV split hoisted out of hot path)
    prepped = prepare_params(params)

    out = cross_attention_forward(prepped, hidden_states, encoder_hidden_states,
                                  encoder_attention_mask, n_head=n_head)
    out = jax.block_until_ready(out)

    ref = reference_forward(params, hidden_states, encoder_hidden_states,
                            encoder_attention_mask, n_head=n_head)
    # tolerance loosened slightly: pl.reciprocal(approx=True) adds ~1e-4 rel. error
    np.testing.assert_allclose(np.asarray(out), np.asarray(ref),
                               rtol=1e-3, atol=1e-3)
    print("KERNEL_OK")
</pallas_src>

<mosaic_0001>
module attributes {stable_mosaic.version = 11 : i64} {
  func.func @fused_cross_attn_kernel(%arg0: i32, %arg1: memref<16x32xf32, #tpu.memory_space<vmem>>, %arg2: memref<16x32xf32, #tpu.memory_space<vmem>>, %arg3: memref<2x1x8xi32, #tpu.memory_space<vmem>>, %arg4: memref<32x32xf32, #tpu.memory_space<vmem>>, %arg5: memref<1x32xf32, #tpu.memory_space<vmem>>, %arg6: memref<32x32xf32, #tpu.memory_space<vmem>>, %arg7: memref<1x32xf32, #tpu.memory_space<vmem>>, %arg8: memref<32x32xf32, #tpu.memory_space<vmem>>, %arg9: memref<1x32xf32, #tpu.memory_space<vmem>>, %arg10: memref<32x32xf32, #tpu.memory_space<vmem>>, %arg11: memref<1x32xf32, #tpu.memory_space<vmem>>, %arg12: memref<16x32xf32, #tpu.memory_space<vmem>>) attributes {dimension_semantics = [#tpu.dimension_semantics<arbitrary>], iteration_bounds = array<i64: 1>, scalar_prefetch = 0 : i64, scratch_operands = 0 : i64, tpu.core_type = #tpu.core_type<tc>, window_params = [{pipeline_mode = #tpu.pipeline_mode<synchronous>, transform_indices = @transform_0, window_bounds = array<i64: 16, 32>}, {pipeline_mode = #tpu.pipeline_mode<synchronous>, transform_indices = @transform_1, window_bounds = array<i64: 16, 32>}, {pipeline_mode = #tpu.pipeline_mode<synchronous>, transform_indices = @transform_2, window_bounds = array<i64: 2, 1, 8>}, {pipeline_mode = #tpu.pipeline_mode<synchronous>, transform_indices = @transform_3, window_bounds = array<i64: 32, 32>}, {pipeline_mode = #tpu.pipeline_mode<synchronous>, transform_indices = @transform_4, window_bounds = array<i64: 1, 32>}, {pipeline_mode = #tpu.pipeline_mode<synchronous>, transform_indices = @transform_5, window_bounds = array<i64: 32, 32>}, {pipeline_mode = #tpu.pipeline_mode<synchronous>, transform_indices = @transform_6, window_bounds = array<i64: 1, 32>}, {pipeline_mode = #tpu.pipeline_mode<synchronous>, transform_indices = @transform_7, window_bounds = array<i64: 32, 32>}, {pipeline_mode = #tpu.pipeline_mode<synchronous>, transform_indices = @transform_8, window_bounds = array<i64: 1, 32>}, {pipeline_mode = #tpu.pipeline_mode<synchronous>, transform_indices = @transform_9, window_bounds = array<i64: 32, 32>}, {pipeline_mode = #tpu.pipeline_mode<synchronous>, transform_indices = @transform_10, window_bounds = array<i64: 1, 32>}, {pipeline_mode = #tpu.pipeline_mode<synchronous>, transform_indices = @transform_11, window_bounds = array<i64: 16, 32>}]} {
    %c0 = arith.constant 0 : index
    %c0_0 = arith.constant 0 : index
    %0 = vector.load %arg1[%c0, %c0_0] : memref<16x32xf32, #tpu.memory_space<vmem>>, vector<16x32xf32>
    %c0_1 = arith.constant 0 : index
    %c0_2 = arith.constant 0 : index
    %1 = vector.load %arg2[%c0_1, %c0_2] : memref<16x32xf32, #tpu.memory_space<vmem>>, vector<16x32xf32>
    %c0_3 = arith.constant 0 : index
    %c0_4 = arith.constant 0 : index
    %2 = vector.load %arg4[%c0_3, %c0_4] : memref<32x32xf32, #tpu.memory_space<vmem>>, vector<32x32xf32>
    %cst = arith.constant dense<0.000000e+00> : vector<16x32xf32>
    %3 = tpu.matmul %0, %2, %cst {dimension_numbers = #tpu.dot_dimension_numbers<[1], [0], [0], [1], [0, 0, 1, 1], [], []>} : vector<16x32xf32>, vector<32x32xf32>, vector<16x32xf32> -> vector<16x32xf32>
    %c0_5 = arith.constant 0 : index
    %c0_6 = arith.constant 0 : index
    %4 = vector.load %arg5[%c0_5, %c0_6] : memref<1x32xf32, #tpu.memory_space<vmem>>, vector<1x32xf32>
    %5 = vector.broadcast %4 : vector<1x32xf32> to vector<16x32xf32>
    %6 = arith.addf %3, %5 : vector<16x32xf32>
    %c0_7 = arith.constant 0 : index
    %c0_8 = arith.constant 0 : index
    %7 = vector.load %arg6[%c0_7, %c0_8] : memref<32x32xf32, #tpu.memory_space<vmem>>, vector<32x32xf32>
    %cst_9 = arith.constant dense<0.000000e+00> : vector<16x32xf32>
    %8 = tpu.matmul %1, %7, %cst_9 {dimension_numbers = #tpu.dot_dimension_numbers<[1], [0], [0], [1], [0, 0, 1, 1], [], []>} : vector<16x32xf32>, vector<32x32xf32>, vector<16x32xf32> -> vector<16x32xf32>
    %c0_10 = arith.constant 0 : index
    %c0_11 = arith.constant 0 : index
    %9 = vector.load %arg7[%c0_10, %c0_11] : memref<1x32xf32, #tpu.memory_space<vmem>>, vector<1x32xf32>
    %10 = vector.broadcast %9 : vector<1x32xf32> to vector<16x32xf32>
    %11 = arith.addf %8, %10 : vector<16x32xf32>
    %c0_12 = arith.constant 0 : index
    %c0_13 = arith.constant 0 : index
    %12 = vector.load %arg8[%c0_12, %c0_13] : memref<32x32xf32, #tpu.memory_space<vmem>>, vector<32x32xf32>
    %cst_14 = arith.constant dense<0.000000e+00> : vector<16x32xf32>
    %13 = tpu.matmul %1, %12, %cst_14 {dimension_numbers = #tpu.dot_dimension_numbers<[1], [0], [0], [1], [0, 0, 1, 1], [], []>} : vector<16x32xf32>, vector<32x32xf32>, vector<16x32xf32> -> vector<16x32xf32>
    %c0_15 = arith.constant 0 : index
    %c0_16 = arith.constant 0 : index
    %14 = vector.load %arg9[%c0_15, %c0_16] : memref<1x32xf32, #tpu.memory_space<vmem>>, vector<1x32xf32>
    %15 = vector.broadcast %14 : vector<1x32xf32> to vector<16x32xf32>
    %16 = arith.addf %13, %15 : vector<16x32xf32>
    %17 = vector.extract_strided_slice %6 {offsets = [0, 0], sizes = [8, 32], strides = [1, 1]} : vector<16x32xf32> to vector<8x32xf32>
    %18 = vector.extract_strided_slice %11 {offsets = [0, 0], sizes = [8, 32], strides = [1, 1]} : vector<16x32xf32> to vector<8x32xf32>
    %19 = vector.extract_strided_slice %16 {offsets = [0, 0], sizes = [8, 32], strides = [1, 1]} : vector<16x32xf32> to vector<8x32xf32>
    %c0_17 = arith.constant 0 : index
    %c0_18 = arith.constant 0 : index
    %c0_19 = arith.constant 0 : index
    %20 = vector.load %arg3[%c0_17, %c0_18, %c0_19] : memref<2x1x8xi32, #tpu.memory_space<vmem>>, vector<1x1x8xi32>
    %21 = vector.shape_cast %20 : vector<1x1x8xi32> to vector<1x8xi32>
    %c0_i32 = arith.constant 0 : i32
    %22 = vector.broadcast %c0_i32 : i32 to vector<1x8xi32>
    %23 = arith.cmpi ne, %21, %22 : vector<1x8xi32>
    %24 = vector.shape_cast %23 : vector<1x8xi1> to vector<1x8xi1>
    %25 = vector.broadcast %24 : vector<1x8xi1> to vector<8x8xi1>
    %26 = vector.extract_strided_slice %17 {offsets = [0, 0], sizes = [8, 8], strides = [1, 1]} : vector<8x32xf32> to vector<8x8xf32>
    %27 = vector.extract_strided_slice %18 {offsets = [0, 0], sizes = [8, 8], strides = [1, 1]} : vector<8x32xf32> to vector<8x8xf32>
    %28 = vector.extract_strided_slice %19 {offsets = [0, 0], sizes = [8, 8], strides = [1, 1]} : vector<8x32xf32> to vector<8x8xf32>
    %cst_20 = arith.constant dense<0.000000e+00> : vector<8x8xf32>
    %29 = tpu.matmul %26, %27, %cst_20 {dimension_numbers = #tpu.dot_dimension_numbers<[1], [1], [0], [0], [0, 0, 1, 0], [], []>} : vector<8x8xf32>, vector<8x8xf32>, vector<8x8xf32> -> vector<8x8xf32>
    %cst_21 = arith.constant 0.353553385 : f32
    %30 = vector.broadcast %cst_21 : f32 to vector<8x8xf32>
    %31 = arith.mulf %29, %30 : vector<8x8xf32>
    %cst_22 = arith.constant -1.000000e+04 : f32
    %32 = vector.broadcast %cst_22 : f32 to vector<8x8xf32>
    %33 = arith.select %25, %31, %32 : vector<8x8xi1>, vector<8x8xf32>
    %cst_23 = arith.constant dense<0xFF800000> : vector<8xf32>
    %34 = vector.multi_reduction <maximumf>, %33, %cst_23 [1] : vector<8x8xf32> to vector<8xf32>
    %35 = vector.shape_cast %34 : vector<8xf32> to vector<8x1xf32>
    %36 = vector.broadcast %35 : vector<8x1xf32> to vector<8x8xf32>
    %37 = arith.subf %33, %36 : vector<8x8xf32>
    %38 = math.exp %37 : vector<8x8xf32>
    %cst_24 = arith.constant dense<0.000000e+00> : vector<8xf32>
    %39 = vector.multi_reduction <add>, %38, %cst_24 [1] : vector<8x8xf32> to vector<8xf32>
    %40 = vector.shape_cast %39 : vector<8xf32> to vector<8x1xf32>
    %41 = tpu.reciprocal %40 {approx = true} : vector<8x1xf32> -> vector<8x1xf32>
    %42 = vector.broadcast %41 : vector<8x1xf32> to vector<8x8xf32>
    %43 = arith.mulf %38, %42 : vector<8x8xf32>
    %cst_25 = arith.constant dense<0.000000e+00> : vector<8x8xf32>
    %44 = tpu.matmul %43, %28, %cst_25 {dimension_numbers = #tpu.dot_dimension_numbers<[1], [0], [0], [1], [0, 0, 1, 1], [], []>} : vector<8x8xf32>, vector<8x8xf32>, vector<8x8xf32> -> vector<8x8xf32>
    %c0_26 = arith.constant 0 : index
    %c0_27 = arith.constant 0 : index
    %45 = vector.load %arg10[%c0_26, %c0_27] : memref<32x32xf32, #tpu.memory_space<vmem>>, vector<8x32xf32>
    %cst_28 = arith.constant dense<0.000000e+00> : vector<8x32xf32>
    %46 = tpu.matmul %44, %45, %cst_28 {dimension_numbers = #tpu.dot_dimension_numbers<[1], [0], [0], [1], [0, 0, 1, 1], [], []>} : vector<8x8xf32>, vector<8x32xf32>, vector<8x32xf32> -> vector<8x32xf32>
    %47 = vector.extract_strided_slice %17 {offsets = [0, 8], sizes = [8, 8], strides = [1, 1]} : vector<8x32xf32> to vector<8x8xf32>
    %48 = vector.extract_strided_slice %18 {offsets = [0, 8], sizes = [8, 8], strides = [1, 1]} : vector<8x32xf32> to vector<8x8xf32>
    %49 = vector.extract_strided_slice %19 {offsets = [0, 8], sizes = [8, 8], strides = [1, 1]} : vector<8x32xf32> to vector<8x8xf32>
    %cst_29 = arith.constant dense<0.000000e+00> : vector<8x8xf32>
    %50 = tpu.matmul %47, %48, %cst_29 {dimension_numbers = #tpu.dot_dimension_numbers<[1], [1], [0], [0], [0, 0, 1, 0], [], []>} : vector<8x8xf32>, vector<8x8xf32>, vector<8x8xf32> -> vector<8x8xf32>
    %cst_30 = arith.constant 0.353553385 : f32
    %51 = vector.broadcast %cst_30 : f32 to vector<8x8xf32>
    %52 = arith.mulf %50, %51 : vector<8x8xf32>
    %cst_31 = arith.constant -1.000000e+04 : f32
    %53 = vector.broadcast %cst_31 : f32 to vector<8x8xf32>
    %54 = arith.select %25, %52, %53 : vector<8x8xi1>, vector<8x8xf32>
    %cst_32 = arith.constant dense<0xFF800000> : vector<8xf32>
    %55 = vector.multi_reduction <maximumf>, %54, %cst_32 [1] : vector<8x8xf32> to vector<8xf32>
    %56 = vector.shape_cast %55 : vector<8xf32> to vector<8x1xf32>
    %57 = vector.broadcast %56 : vector<8x1xf32> to vector<8x8xf32>
    %58 = arith.subf %54, %57 : vector<8x8xf32>
    %59 = math.exp %58 : vector<8x8xf32>
    %cst_33 = arith.constant dense<0.000000e+00> : vector<8xf32>
    %60 = vector.multi_reduction <add>, %59, %cst_33 [1] : vector<8x8xf32> to vector<8xf32>
    %61 = vector.shape_cast %60 : vector<8xf32> to vector<8x1xf32>
    %62 = tpu.reciprocal %61 {approx = true} : vector<8x1xf32> -> vector<8x1xf32>
    %63 = vector.broadcast %62 : vector<8x1xf32> to vector<8x8xf32>
    %64 = arith.mulf %59, %63 : vector<8x8xf32>
    %cst_34 = arith.constant dense<0.000000e+00> : vector<8x8xf32>
    %65 = tpu.matmul %64, %49, %cst_34 {dimension_numbers = #tpu.dot_dimension_numbers<[1], [0], [0], [1], [0, 0, 1, 1], [], []>} : vector<8x8xf32>, vector<8x8xf32>, vector<8x8xf32> -> vector<8x8xf32>
    %c8 = arith.constant 8 : index
    %c0_35 = arith.constant 0 : index
    %66 = vector.load %arg10[%c8, %c0_35] : memref<32x32xf32, #tpu.memory_space<vmem>>, vector<8x32xf32>
    %cst_36 = arith.constant dense<0.000000e+00> : vector<8x32xf32>
    %67 = tpu.matmul %65, %66, %cst_36 {dimension_numbers = #tpu.dot_dimension_numbers<[1], [0], [0], [1], [0, 0, 1, 1], [], []>} : vector<8x8xf32>, vector<8x32xf32>, vector<8x32xf32> -> vector<8x32xf32>
    %68 = arith.addf %46, %67 : vector<8x32xf32>
    %69 = vector.extract_strided_slice %17 {offsets = [0, 16], sizes = [8, 8], strides = [1, 1]} : vector<8x32xf32> to vector<8x8xf32>
    %70 = vector.extract_strided_slice %18 {offsets = [0, 16], sizes = [8, 8], strides = [1, 1]} : vector<8x32xf32> to vector<8x8xf32>
    %71 = vector.extract_strided_slice %19 {offsets = [0, 16], sizes = [8, 8], strides = [1, 1]} : vector<8x32xf32> to vector<8x8xf32>
    %cst_37 = arith.constant dense<0.000000e+00> : vector<8x8xf32>
    %72 = tpu.matmul %69, %70, %cst_37 {dimension_numbers = #tpu.dot_dimension_numbers<[1], [1], [0], [0], [0, 0, 1, 0], [], []>} : vector<8x8xf32>, vector<8x8xf32>, vector<8x8xf32> -> vector<8x8xf32>
    %cst_38 = arith.constant 0.353553385 : f32
    %73 = vector.broadcast %cst_38 : f32 to vector<8x8xf32>
    %74 = arith.mulf %72, %73 : vector<8x8xf32>
    %cst_39 = arith.constant -1.000000e+04 : f32
    %75 = vector.broadcast %cst_39 : f32 to vector<8x8xf32>
    %76 = arith.select %25, %74, %75 : vector<8x8xi1>, vector<8x8xf32>
    %cst_40 = arith.constant dense<0xFF800000> : vector<8xf32>
    %77 = vector.multi_reduction <maximumf>, %76, %cst_40 [1] : vector<8x8xf32> to vector<8xf32>
    %78 = vector.shape_cast %77 : vector<8xf32> to vector<8x1xf32>
    %79 = vector.broadcast %78 : vector<8x1xf32> to vector<8x8xf32>
    %80 = arith.subf %76, %79 : vector<8x8xf32>
    %81 = math.exp %80 : vector<8x8xf32>
    %cst_41 = arith.constant dense<0.000000e+00> : vector<8xf32>
    %82 = vector.multi_reduction <add>, %81, %cst_41 [1] : vector<8x8xf32> to vector<8xf32>
    %83 = vector.shape_cast %82 : vector<8xf32> to vector<8x1xf32>
    %84 = tpu.reciprocal %83 {approx = true} : vector<8x1xf32> -> vector<8x1xf32>
    %85 = vector.broadcast %84 : vector<8x1xf32> to vector<8x8xf32>
    %86 = arith.mulf %81, %85 : vector<8x8xf32>
    %cst_42 = arith.constant dense<0.000000e+00> : vector<8x8xf32>
    %87 = tpu.matmul %86, %71, %cst_42 {dimension_numbers = #tpu.dot_dimension_numbers<[1], [0], [0], [1], [0, 0, 1, 1], [], []>} : vector<8x8xf32>, vector<8x8xf32>, vector<8x8xf32> -> vector<8x8xf32>
    %c16 = arith.constant 16 : index
    %c0_43 = arith.constant 0 : index
    %88 = vector.load %arg10[%c16, %c0_43] : memref<32x32xf32, #tpu.memory_space<vmem>>, vector<8x32xf32>
    %cst_44 = arith.constant dense<0.000000e+00> : vector<8x32xf32>
    %89 = tpu.matmul %87, %88, %cst_44 {dimension_numbers = #tpu.dot_dimension_numbers<[1], [0], [0], [1], [0, 0, 1, 1], [], []>} : vector<8x8xf32>, vector<8x32xf32>, vector<8x32xf32> -> vector<8x32xf32>
    %90 = arith.addf %68, %89 : vector<8x32xf32>
    %91 = vector.extract_strided_slice %17 {offsets = [0, 24], sizes = [8, 8], strides = [1, 1]} : vector<8x32xf32> to vector<8x8xf32>
    %92 = vector.extract_strided_slice %18 {offsets = [0, 24], sizes = [8, 8], strides = [1, 1]} : vector<8x32xf32> to vector<8x8xf32>
    %93 = vector.extract_strided_slice %19 {offsets = [0, 24], sizes = [8, 8], strides = [1, 1]} : vector<8x32xf32> to vector<8x8xf32>
    %cst_45 = arith.constant dense<0.000000e+00> : vector<8x8xf32>
    %94 = tpu.matmul %91, %92, %cst_45 {dimension_numbers = #tpu.dot_dimension_numbers<[1], [1], [0], [0], [0, 0, 1, 0], [], []>} : vector<8x8xf32>, vector<8x8xf32>, vector<8x8xf32> -> vector<8x8xf32>
    %cst_46 = arith.constant 0.353553385 : f32
    %95 = vector.broadcast %cst_46 : f32 to vector<8x8xf32>
    %96 = arith.mulf %94, %95 : vector<8x8xf32>
    %cst_47 = arith.constant -1.000000e+04 : f32
    %97 = vector.broadcast %cst_47 : f32 to vector<8x8xf32>
    %98 = arith.select %25, %96, %97 : vector<8x8xi1>, vector<8x8xf32>
    %cst_48 = arith.constant dense<0xFF800000> : vector<8xf32>
    %99 = vector.multi_reduction <maximumf>, %98, %cst_48 [1] : vector<8x8xf32> to vector<8xf32>
    %100 = vector.shape_cast %99 : vector<8xf32> to vector<8x1xf32>
    %101 = vector.broadcast %100 : vector<8x1xf32> to vector<8x8xf32>
    %102 = arith.subf %98, %101 : vector<8x8xf32>
    %103 = math.exp %102 : vector<8x8xf32>
    %cst_49 = arith.constant dense<0.000000e+00> : vector<8xf32>
    %104 = vector.multi_reduction <add>, %103, %cst_49 [1] : vector<8x8xf32> to vector<8xf32>
    %105 = vector.shape_cast %104 : vector<8xf32> to vector<8x1xf32>
    %106 = tpu.reciprocal %105 {approx = true} : vector<8x1xf32> -> vector<8x1xf32>
    %107 = vector.broadcast %106 : vector<8x1xf32> to vector<8x8xf32>
    %108 = arith.mulf %103, %107 : vector<8x8xf32>
    %cst_50 = arith.constant dense<0.000000e+00> : vector<8x8xf32>
    %109 = tpu.matmul %108, %93, %cst_50 {dimension_numbers = #tpu.dot_dimension_numbers<[1], [0], [0], [1], [0, 0, 1, 1], [], []>} : vector<8x8xf32>, vector<8x8xf32>, vector<8x8xf32> -> vector<8x8xf32>
    %c24 = arith.constant 24 : index
    %c0_51 = arith.constant 0 : index
    %110 = vector.load %arg10[%c24, %c0_51] : memref<32x32xf32, #tpu.memory_space<vmem>>, vector<8x32xf32>
    %cst_52 = arith.constant dense<0.000000e+00> : vector<8x32xf32>
    %111 = tpu.matmul %109, %110, %cst_52 {dimension_numbers = #tpu.dot_dimension_numbers<[1], [0], [0], [1], [0, 0, 1, 1], [], []>} : vector<8x8xf32>, vector<8x32xf32>, vector<8x32xf32> -> vector<8x32xf32>
    %112 = arith.addf %90, %111 : vector<8x32xf32>
    %c0_53 = arith.constant 0 : index
    %c0_54 = arith.constant 0 : index
    %113 = vector.load %arg11[%c0_53, %c0_54] : memref<1x32xf32, #tpu.memory_space<vmem>>, vector<1x32xf32>
    %114 = vector.broadcast %113 : vector<1x32xf32> to vector<8x32xf32>
    %115 = arith.addf %112, %114 : vector<8x32xf32>
    %c0_55 = arith.constant 0 : index
    %c0_56 = arith.constant 0 : index
    %116 = vector.load %arg12[%c0_55, %c0_56] : memref<16x32xf32, #tpu.memory_space<vmem>>, vector<8x32xf32>
    tpu.vector_store %arg12[%c0_55, %c0_56], %115 {strides = array<i32>} : memref<16x32xf32, #tpu.memory_space<vmem>>, vector<8x32xf32>,
    %117 = vector.extract_strided_slice %6 {offsets = [8, 0], sizes = [8, 32], strides = [1, 1]} : vector<16x32xf32> to vector<8x32xf32>
    %118 = vector.extract_strided_slice %11 {offsets = [8, 0], sizes = [8, 32], strides = [1, 1]} : vector<16x32xf32> to vector<8x32xf32>
    %119 = vector.extract_strided_slice %16 {offsets = [8, 0], sizes = [8, 32], strides = [1, 1]} : vector<16x32xf32> to vector<8x32xf32>
    %c1 = arith.constant 1 : index
    %c0_57 = arith.constant 0 : index
    %c0_58 = arith.constant 0 : index
    %120 = vector.load %arg3[%c1, %c0_57, %c0_58] : memref<2x1x8xi32, #tpu.memory_space<vmem>>, vector<1x1x8xi32>
    %121 = vector.shape_cast %120 : vector<1x1x8xi32> to vector<1x8xi32>
    %c0_i32_59 = arith.constant 0 : i32
    %122 = vector.broadcast %c0_i32_59 : i32 to vector<1x8xi32>
    %123 = arith.cmpi ne, %121, %122 : vector<1x8xi32>
    %124 = vector.shape_cast %123 : vector<1x8xi1> to vector<1x8xi1>
    %125 = vector.broadcast %124 : vector<1x8xi1> to vector<8x8xi1>
    %126 = vector.extract_strided_slice %117 {offsets = [0, 0], sizes = [8, 8], strides = [1, 1]} : vector<8x32xf32> to vector<8x8xf32>
    %127 = vector.extract_strided_slice %118 {offsets = [0, 0], sizes = [8, 8], strides = [1, 1]} : vector<8x32xf32> to vector<8x8xf32>
    %128 = vector.extract_strided_slice %119 {offsets = [0, 0], sizes = [8, 8], strides = [1, 1]} : vector<8x32xf32> to vector<8x8xf32>
    %cst_60 = arith.constant dense<0.000000e+00> : vector<8x8xf32>
    %129 = tpu.matmul %126, %127, %cst_60 {dimension_numbers = #tpu.dot_dimension_numbers<[1], [1], [0], [0], [0, 0, 1, 0], [], []>} : vector<8x8xf32>, vector<8x8xf32>, vector<8x8xf32> -> vector<8x8xf32>
    %cst_61 = arith.constant 0.353553385 : f32
    %130 = vector.broadcast %cst_61 : f32 to vector<8x8xf32>
    %131 = arith.mulf %129, %130 : vector<8x8xf32>
    %cst_62 = arith.constant -1.000000e+04 : f32
    %132 = vector.broadcast %cst_62 : f32 to vector<8x8xf32>
    %133 = arith.select %125, %131, %132 : vector<8x8xi1>, vector<8x8xf32>
    %cst_63 = arith.constant dense<0xFF800000> : vector<8xf32>
    %134 = vector.multi_reduction <maximumf>, %133, %cst_63 [1] : vector<8x8xf32> to vector<8xf32>
    %135 = vector.shape_cast %134 : vector<8xf32> to vector<8x1xf32>
    %136 = vector.broadcast %135 : vector<8x1xf32> to vector<8x8xf32>
    %137 = arith.subf %133, %136 : vector<8x8xf32>
    %138 = math.exp %137 : vector<8x8xf32>
    %cst_64 = arith.constant dense<0.000000e+00> : vector<8xf32>
    %139 = vector.multi_reduction <add>, %138, %cst_64 [1] : vector<8x8xf32> to vector<8xf32>
    %140 = vector.shape_cast %139 : vector<8xf32> to vector<8x1xf32>
    %141 = tpu.reciprocal %140 {approx = true} : vector<8x1xf32> -> vector<8x1xf32>
    %142 = vector.broadcast %141 : vector<8x1xf32> to vector<8x8xf32>
    %143 = arith.mulf %138, %142 : vector<8x8xf32>
    %cst_65 = arith.constant dense<0.000000e+00> : vector<8x8xf32>
    %144 = tpu.matmul %143, %128, %cst_65 {dimension_numbers = #tpu.dot_dimension_numbers<[1], [0], [0], [1], [0, 0, 1, 1], [], []>} : vector<8x8xf32>, vector<8x8xf32>, vector<8x8xf32> -> vector<8x8xf32>
    %c0_66 = arith.constant 0 : index
    %c0_67 = arith.constant 0 : index
    %145 = vector.load %arg10[%c0_66, %c0_67] : memref<32x32xf32, #tpu.memory_space<vmem>>, vector<8x32xf32>
    %cst_68 = arith.constant dense<0.000000e+00> : vector<8x32xf32>
    %146 = tpu.matmul %144, %145, %cst_68 {dimension_numbers = #tpu.dot_dimension_numbers<[1], [0], [0], [1], [0, 0, 1, 1], [], []>} : vector<8x8xf32>, vector<8x32xf32>, vector<8x32xf32> -> vector<8x32xf32>
    %147 = vector.extract_strided_slice %117 {offsets = [0, 8], sizes = [8, 8], strides = [1, 1]} : vector<8x32xf32> to vector<8x8xf32>
    %148 = vector.extract_strided_slice %118 {offsets = [0, 8], sizes = [8, 8], strides = [1, 1]} : vector<8x32xf32> to vector<8x8xf32>
    %149 = vector.extract_strided_slice %119 {offsets = [0, 8], sizes = [8, 8], strides = [1, 1]} : vector<8x32xf32> to vector<8x8xf32>
    %cst_69 = arith.constant dense<0.000000e+00> : vector<8x8xf32>
    %150 = tpu.matmul %147, %148, %cst_69 {dimension_numbers = #tpu.dot_dimension_numbers<[1], [1], [0], [0], [0, 0, 1, 0], [], []>} : vector<8x8xf32>, vector<8x8xf32>, vector<8x8xf32> -> vector<8x8xf32>
    %cst_70 = arith.constant 0.353553385 : f32
    %151 = vector.broadcast %cst_70 : f32 to vector<8x8xf32>
    %152 = arith.mulf %150, %151 : vector<8x8xf32>
    %cst_71 = arith.constant -1.000000e+04 : f32
    %153 = vector.broadcast %cst_71 : f32 to vector<8x8xf32>
    %154 = arith.select %125, %152, %153 : vector<8x8xi1>, vector<8x8xf32>
    %cst_72 = arith.constant dense<0xFF800000> : vector<8xf32>
    %155 = vector.multi_reduction <maximumf>, %154, %cst_72 [1] : vector<8x8xf32> to vector<8xf32>
    %156 = vector.shape_cast %155 : vector<8xf32> to vector<8x1xf32>
    %157 = vector.broadcast %156 : vector<8x1xf32> to vector<8x8xf32>
    %158 = arith.subf %154, %157 : vector<8x8xf32>
    %159 = math.exp %158 : vector<8x8xf32>
    %cst_73 = arith.constant dense<0.000000e+00> : vector<8xf32>
    %160 = vector.multi_reduction <add>, %159, %cst_73 [1] : vector<8x8xf32> to vector<8xf32>
    %161 = vector.shape_cast %160 : vector<8xf32> to vector<8x1xf32>
    %162 = tpu.reciprocal %161 {approx = true} : vector<8x1xf32> -> vector<8x1xf32>
    %163 = vector.broadcast %162 : vector<8x1xf32> to vector<8x8xf32>
    %164 = arith.mulf %159, %163 : vector<8x8xf32>
    %cst_74 = arith.constant dense<0.000000e+00> : vector<8x8xf32>
    %165 = tpu.matmul %164, %149, %cst_74 {dimension_numbers = #tpu.dot_dimension_numbers<[1], [0], [0], [1], [0, 0, 1, 1], [], []>} : vector<8x8xf32>, vector<8x8xf32>, vector<8x8xf32> -> vector<8x8xf32>
    %c8_75 = arith.constant 8 : index
    %c0_76 = arith.constant 0 : index
    %166 = vector.load %arg10[%c8_75, %c0_76] : memref<32x32xf32, #tpu.memory_space<vmem>>, vector<8x32xf32>
    %cst_77 = arith.constant dense<0.000000e+00> : vector<8x32xf32>
    %167 = tpu.matmul %165, %166, %cst_77 {dimension_numbers = #tpu.dot_dimension_numbers<[1], [0], [0], [1], [0, 0, 1, 1], [], []>} : vector<8x8xf32>, vector<8x32xf32>, vector<8x32xf32> -> vector<8x32xf32>
    %168 = arith.addf %146, %167 : vector<8x32xf32>
    %169 = vector.extract_strided_slice %117 {offsets = [0, 16], sizes = [8, 8], strides = [1, 1]} : vector<8x32xf32> to vector<8x8xf32>
    %170 = vector.extract_strided_slice %118 {offsets = [0, 16], sizes = [8, 8], strides = [1, 1]} : vector<8x32xf32> to vector<8x8xf32>
    %171 = vector.extract_strided_slice %119 {offsets = [0, 16], sizes = [8, 8], strides = [1, 1]} : vector<8x32xf32> to vector<8x8xf32>
    %cst_78 = arith.constant dense<0.000000e+00> : vector<8x8xf32>
    %172 = tpu.matmul %169, %170, %cst_78 {dimension_numbers = #tpu.dot_dimension_numbers<[1], [1], [0], [0], [0, 0, 1, 0], [], []>} : vector<8x8xf32>, vector<8x8xf32>, vector<8x8xf32> -> vector<8x8xf32>
    %cst_79 = arith.constant 0.353553385 : f32
    %173 = vector.broadcast %cst_79 : f32 to vector<8x8xf32>
    %174 = arith.mulf %172, %173 : vector<8x8xf32>
    %cst_80 = arith.constant -1.000000e+04 : f32
    %175 = vector.broadcast %cst_80 : f32 to vector<8x8xf32>
    %176 = arith.select %125, %174, %175 : vector<8x8xi1>, vector<8x8xf32>
    %cst_81 = arith.constant dense<0xFF800000> : vector<8xf32>
    %177 = vector.multi_reduction <maximumf>, %176, %cst_81 [1] : vector<8x8xf32> to vector<8xf32>
    %178 = vector.shape_cast %177 : vector<8xf32> to vector<8x1xf32>
    %179 = vector.broadcast %178 : vector<8x1xf32> to vector<8x8xf32>
    %180 = arith.subf %176, %179 : vector<8x8xf32>
    %181 = math.exp %180 : vector<8x8xf32>
    %cst_82 = arith.constant dense<0.000000e+00> : vector<8xf32>
    %182 = vector.multi_reduction <add>, %181, %cst_82 [1] : vector<8x8xf32> to vector<8xf32>
    %183 = vector.shape_cast %182 : vector<8xf32> to vector<8x1xf32>
    %184 = tpu.reciprocal %183 {approx = true} : vector<8x1xf32> -> vector<8x1xf32>
    %185 = vector.broadcast %184 : vector<8x1xf32> to vector<8x8xf32>
    %186 = arith.mulf %181, %185 : vector<8x8xf32>
    %cst_83 = arith.constant dense<0.000000e+00> : vector<8x8xf32>
    %187 = tpu.matmul %186, %171, %cst_83 {dimension_numbers = #tpu.dot_dimension_numbers<[1], [0], [0], [1], [0, 0, 1, 1], [], []>} : vector<8x8xf32>, vector<8x8xf32>, vector<8x8xf32> -> vector<8x8xf32>
    %c16_84 = arith.constant 16 : index
    %c0_85 = arith.constant 0 : index
    %188 = vector.load %arg10[%c16_84, %c0_85] : memref<32x32xf32, #tpu.memory_space<vmem>>, vector<8x32xf32>
    %cst_86 = arith.constant dense<0.000000e+00> : vector<8x32xf32>
    %189 = tpu.matmul %187, %188, %cst_86 {dimension_numbers = #tpu.dot_dimension_numbers<[1], [0], [0], [1], [0, 0, 1, 1], [], []>} : vector<8x8xf32>, vector<8x32xf32>, vector<8x32xf32> -> vector<8x32xf32>
    %190 = arith.addf %168, %189 : vector<8x32xf32>
    %191 = vector.extract_strided_slice %117 {offsets = [0, 24], sizes = [8, 8], strides = [1, 1]} : vector<8x32xf32> to vector<8x8xf32>
    %192 = vector.extract_strided_slice %118 {offsets = [0, 24], sizes = [8, 8], strides = [1, 1]} : vector<8x32xf32> to vector<8x8xf32>
    %193 = vector.extract_strided_slice %119 {offsets = [0, 24], sizes = [8, 8], strides = [1, 1]} : vector<8x32xf32> to vector<8x8xf32>
    %cst_87 = arith.constant dense<0.000000e+00> : vector<8x8xf32>
    %194 = tpu.matmul %191, %192, %cst_87 {dimension_numbers = #tpu.dot_dimension_numbers<[1], [1], [0], [0], [0, 0, 1, 0], [], []>} : vector<8x8xf32>, vector<8x8xf32>, vector<8x8xf32> -> vector<8x8xf32>
    %cst_88 = arith.constant 0.353553385 : f32
    %195 = vector.broadcast %cst_88 : f32 to vector<8x8xf32>
    %196 = arith.mulf %194, %195 : vector<8x8xf32>
    %cst_89 = arith.constant -1.000000e+04 : f32
    %197 = vector.broadcast %cst_89 : f32 to vector<8x8xf32>
    %198 = arith.select %125, %196, %197 : vector<8x8xi1>, vector<8x8xf32>
    %cst_90 = arith.constant dense<0xFF800000> : vector<8xf32>
    %199 = vector.multi_reduction <maximumf>, %198, %cst_90 [1] : vector<8x8xf32> to vector<8xf32>
    %200 = vector.shape_cast %199 : vector<8xf32> to vector<8x1xf32>
    %201 = vector.broadcast %200 : vector<8x1xf32> to vector<8x8xf32>
    %202 = arith.subf %198, %201 : vector<8x8xf32>
    %203 = math.exp %202 : vector<8x8xf32>
    %cst_91 = arith.constant dense<0.000000e+00> : vector<8xf32>
    %204 = vector.multi_reduction <add>, %203, %cst_91 [1] : vector<8x8xf32> to vector<8xf32>
    %205 = vector.shape_cast %204 : vector<8xf32> to vector<8x1xf32>
    %206 = tpu.reciprocal %205 {approx = true} : vector<8x1xf32> -> vector<8x1xf32>
    %207 = vector.broadcast %206 : vector<8x1xf32> to vector<8x8xf32>
    %208 = arith.mulf %203, %207 : vector<8x8xf32>
    %cst_92 = arith.constant dense<0.000000e+00> : vector<8x8xf32>
    %209 = tpu.matmul %208, %193, %cst_92 {dimension_numbers = #tpu.dot_dimension_numbers<[1], [0], [0], [1], [0, 0, 1, 1], [], []>} : vector<8x8xf32>, vector<8x8xf32>, vector<8x8xf32> -> vector<8x8xf32>
    %c24_93 = arith.constant 24 : index
    %c0_94 = arith.constant 0 : index
    %210 = vector.load %arg10[%c24_93, %c0_94] : memref<32x32xf32, #tpu.memory_space<vmem>>, vector<8x32xf32>
    %cst_95 = arith.constant dense<0.000000e+00> : vector<8x32xf32>
    %211 = tpu.matmul %209, %210, %cst_95 {dimension_numbers = #tpu.dot_dimension_numbers<[1], [0], [0], [1], [0, 0, 1, 1], [], []>} : vector<8x8xf32>, vector<8x32xf32>, vector<8x32xf32> -> vector<8x32xf32>
    %212 = arith.addf %190, %211 : vector<8x32xf32>
    %c0_96 = arith.constant 0 : index
    %c0_97 = arith.constant 0 : index
    %213 = vector.load %arg11[%c0_96, %c0_97] : memref<1x32xf32, #tpu.memory_space<vmem>>, vector<1x32xf32>
    %214 = vector.broadcast %213 : vector<1x32xf32> to vector<8x32xf32>
    %215 = arith.addf %212, %214 : vector<8x32xf32>
    %c8_98 = arith.constant 8 : index
    %c0_99 = arith.constant 0 : index
    %216 = vector.load %arg12[%c8_98, %c0_99] : memref<16x32xf32, #tpu.memory_space<vmem>>, vector<8x32xf32>
    tpu.vector_store %arg12[%c8_98, %c0_99], %215 {strides = array<i32>} : memref<16x32xf32, #tpu.memory_space<vmem>>, vector<8x32xf32>,
    return
  }
  func.func @transform_0(%arg0: i32) -> (i32, i32) {
    %c0_i32 = arith.constant 0 : i32
    %c0_i32_0 = arith.constant 0 : i32
    %c0_i32_1 = arith.constant 0 : i32
    return %c0_i32, %c0_i32_0 : i32, i32
  }
  func.func @transform_1(%arg0: i32) -> (i32, i32) {
    %c0_i32 = arith.constant 0 : i32
    %c0_i32_0 = arith.constant 0 : i32
    %c0_i32_1 = arith.constant 0 : i32
    return %c0_i32, %c0_i32_0 : i32, i32
  }
  func.func @transform_2(%arg0: i32) -> (i32, i32, i32) {
    %c0_i32 = arith.constant 0 : i32
    %c0_i32_0 = arith.constant 0 : i32
    %c0_i32_1 = arith.constant 0 : i32
    %c0_i32_2 = arith.constant 0 : i32
    return %c0_i32, %c0_i32_0, %c0_i32_1 : i32, i32, i32
  }
  func.func @transform_3(%arg0: i32) -> (i32, i32) {
    %c0_i32 = arith.constant 0 : i32
    %c0_i32_0 = arith.constant 0 : i32
    %c0_i32_1 = arith.constant 0 : i32
    return %c0_i32, %c0_i32_0 : i32, i32
  }
  func.func @transform_4(%arg0: i32) -> (i32, i32) {
    %c0_i32 = arith.constant 0 : i32
    %c0_i32_0 = arith.constant 0 : i32
    %c0_i32_1 = arith.constant 0 : i32
    return %c0_i32, %c0_i32_0 : i32, i32
  }
  func.func @transform_5(%arg0: i32) -> (i32, i32) {
    %c0_i32 = arith.constant 0 : i32
    %c0_i32_0 = arith.constant 0 : i32
    %c0_i32_1 = arith.constant 0 : i32
    return %c0_i32, %c0_i32_0 : i32, i32
  }
  func.func @transform_6(%arg0: i32) -> (i32, i32) {
    %c0_i32 = arith.constant 0 : i32
    %c0_i32_0 = arith.constant 0 : i32
    %c0_i32_1 = arith.constant 0 : i32
    return %c0_i32, %c0_i32_0 : i32, i32
  }
  func.func @transform_7(%arg0: i32) -> (i32, i32) {
    %c0_i32 = arith.constant 0 : i32
    %c0_i32_0 = arith.constant 0 : i32
    %c0_i32_1 = arith.constant 0 : i32
    return %c0_i32, %c0_i32_0 : i32, i32
  }
  func.func @transform_8(%arg0: i32) -> (i32, i32) {
    %c0_i32 = arith.constant 0 : i32
    %c0_i32_0 = arith.constant 0 : i32
    %c0_i32_1 = arith.constant 0 : i32
    return %c0_i32, %c0_i32_0 : i32, i32
  }
  func.func @transform_9(%arg0: i32) -> (i32, i32) {
    %c0_i32 = arith.constant 0 : i32
    %c0_i32_0 = arith.constant 0 : i32
    %c0_i32_1 = arith.constant 0 : i32
    return %c0_i32, %c0_i32_0 : i32, i32
  }
  func.func @transform_10(%arg0: i32) -> (i32, i32) {
    %c0_i32 = arith.constant 0 : i32
    %c0_i32_0 = arith.constant 0 : i32
    %c0_i32_1 = arith.constant 0 : i32
    return %c0_i32, %c0_i32_0 : i32, i32
  }
  func.func @transform_11(%arg0: i32) -> (i32, i32) {
    %c0_i32 = arith.constant 0 : i32
    %c0_i32_0 = arith.constant 0 : i32
    %c0_i32_1 = arith.constant 0 : i32
    return %c0_i32, %c0_i32_0 : i32, i32
  }
}

</mosaic_0001>

<llo_original>
// kernel: cross_attention_forward.1
$region0: #{cross_attention_forward.1}
  #allocation0 [shape = 'u32[]', space=smem, size = 0x4, offset = 0x4, fixed_abs, tag = 'smem constant byte address 0x4 - core index']
  #allocation1 [shape = 'u32[144,128]{1,0:T(1,128)}', space=vmem, size = 0x12000, scoped, tag = 'internal scratch']
  %s0 = inlined_call_operand.vmem [shape: f32[16,32], index: 0, kind: input, shape index: {}]
  %s1 = inlined_call_operand.hbm [shape: f32[16,32], index: 1, kind: input, shape index: {}]
  %s2 = inlined_call_operand.vmem [shape: s32[2,1,8], index: 2, kind: input, shape index: {}]
  %s3 = inlined_call_operand.hbm [shape: f32[32,32], index: 3, kind: input, shape index: {}]
  %s4 = inlined_call_operand.vmem [shape: f32[1,32], index: 4, kind: input, shape index: {}]
  %s5 = inlined_call_operand.hbm [shape: f32[32,32], index: 5, kind: input, shape index: {}]
  %s6 = inlined_call_operand.vmem [shape: f32[1,32], index: 6, kind: input, shape index: {}]
  %s7 = inlined_call_operand.hbm [shape: f32[32,32], index: 7, kind: input, shape index: {}]
  %s8 = inlined_call_operand.hbm [shape: f32[1,32], index: 8, kind: input, shape index: {}]
  %s9 = inlined_call_operand.hbm [shape: f32[32,32], index: 9, kind: input, shape index: {}]
  %s10 = inlined_call_operand.hbm [shape: f32[1,32], index: 10, kind: input, shape index: {}]
  %s11 = inlined_call_operand.hbm [shape: f32[16,32], index: 11, kind: output, shape index: {}]
  %s12 = sld [smem:[#allocation0]]
  $region82: #{cross_attention_forward.1} parent=0
    _
  %s14 = ssub.s32 1, %s12
  %s15 = scalar_select 0, %s14, %s12
  $region1: #{cross_attention_forward.1} parent=0
    #allocation2 [shape = 'u8[8192]{0}', space=vmem, size = 0x2000, scoped, tag = 'input window, operand 1, single buffered']
    #allocation3 [shape = 's32[1]{0}', space=sflag, size = 0x4, scoped, tag = 'scoped memory for cross_attention_forward.1']
    #allocation4 [shape = 's32[1]{0}', space=sflag, size = 0x4, scoped, tag = 'scoped memory for cross_attention_forward.1']
    #allocation5 [shape = 'u8[16384]{0}', space=vmem, size = 0x4000, scoped, tag = 'input window, operand 3, single buffered']
    #allocation6 [shape = 's32[1]{0}', space=sflag, size = 0x4, scoped, tag = 'scoped memory for cross_attention_forward.1']
    #allocation7 [shape = 'u8[16384]{0}', space=vmem, size = 0x4000, scoped, tag = 'input window, operand 5, single buffered']
    #allocation8 [shape = 'u8[16384]{0}', space=vmem, size = 0x4000, scoped, tag = 'input window, operand 7, single buffered']
    #allocation9 [shape = 's32[1]{0}', space=sflag, size = 0x4, scoped, tag = 'scoped memory for cross_attention_forward.1']
    #allocation10 [shape = 'u8[512]{0}', space=vmem, size = 0x400, scoped, tag = 'input window, operand 8, single buffered']
    #allocation11 [shape = 'u8[16384]{0}', space=vmem, size = 0x4000, scoped, tag = 'input window, operand 9, single buffered']
    #allocation12 [shape = 's32[1]{0}', space=sflag, size = 0x4, scoped, tag = 'scoped memory for cross_attention_forward.1']
    #allocation13 [shape = 'u8[512]{0}', space=vmem, size = 0x400, scoped, tag = 'input window, operand 10, single buffered']
    #allocation14 [shape = 'u8[8192]{0}', space=vmem, size = 0x2000, scoped, tag = 'output window, operand 0, single buffered']
    %16 = vsyncpa [#allocation3], 0
    %17 = vsyncpa [#allocation6], 0
    %18 = vsyncpa [#allocation9], 0
    %19 = vsyncpa [#allocation12], 0
    %20 = vsyncpa [#allocation4], 0
    // Predicated region
    $region2: #{cross_attention_forward.1} parent=1 // pred_check
      _
    $region3: #{cross_attention_forward.1} parent=1 // pred_check_branch
      %22 = sbr.rel (0) target = $region5
    $region4: #{cross_attention_forward.1} parent=1 // pred_region
      _
    $region5: #{cross_attention_forward.1} parent=1 // pred_fallthru
      _
    // Predicated region
    $region6: #{cross_attention_forward.1} parent=1 // pred_check
      _
    $region7: #{cross_attention_forward.1} parent=1 // pred_check_branch
      %24 = sbr.rel (0) target = $region9
    $region8: #{cross_attention_forward.1} parent=1 // pred_region
      %s26 = ssub.s32 256, 256
      %27 = vsyncadd [#allocation3], %s26
      %s28 = sshll.u32 [#allocation2], 4
      %s29 = int_to_ptr.vmem [resolvable:$true] %s28
      %34 = dma.hbm_to_vmem [thread:$0]  %s1, 256, %s29, [#allocation3], 128, 128, 8
    $region9: #{cross_attention_forward.1} parent=1 // pred_fallthru
      _
    // Predicated region
    $region10: #{cross_attention_forward.1} parent=1 // pred_check
      _
    $region11: #{cross_attention_forward.1} parent=1 // pred_check_branch
      %36 = sbr.rel (0) target = $region13
    $region12: #{cross_attention_forward.1} parent=1 // pred_region
      _
    $region13: #{cross_attention_forward.1} parent=1 // pred_fallthru
      _
    // Predicated region
    $region14: #{cross_attention_forward.1} parent=1 // pred_check
      _
    $region15: #{cross_attention_forward.1} parent=1 // pred_check_branch
      %38 = sbr.rel (0) target = $region17
    $region16: #{cross_attention_forward.1} parent=1 // pred_region
      %s40 = ssub.s32 512, 512
      %41 = vsyncadd [#allocation6], %s40
      %s42 = sshll.u32 [#allocation5], 4
      %s43 = int_to_ptr.vmem [resolvable:$true] %s42
      %48 = dma.hbm_to_vmem [thread:$0]  %s3, 512, %s43, [#allocation6], 128, 128, 8
    $region17: #{cross_attention_forward.1} parent=1 // pred_fallthru
      _
    // Predicated region
    $region18: #{cross_attention_forward.1} parent=1 // pred_check
      _
    $region19: #{cross_attention_forward.1} parent=1 // pred_check_branch
      %50 = sbr.rel (0) target = $region21
    $region20: #{cross_attention_forward.1} parent=1 // pred_region
      _
    $region21: #{cross_attention_forward.1} parent=1 // pred_fallthru
      _
    // Predicated region
    $region22: #{cross_attention_forward.1} parent=1 // pred_check
      _
    $region23: #{cross_attention_forward.1} parent=1 // pred_check_branch
      %52 = sbr.rel (0) target = $region25
    $region24: #{cross_attention_forward.1} parent=1 // pred_region
      %s54 = ssub.s32 512, 512
      %55 = vsyncadd [#allocation6], %s54
      %s56 = sshll.u32 [#allocation7], 4
      %s57 = int_to_ptr.vmem [resolvable:$true] %s56
      %62 = dma.hbm_to_vmem [thread:$0]  %s5, 512, %s57, [#allocation6], 128, 128, 8
    $region25: #{cross_attention_forward.1} parent=1 // pred_fallthru
      _
    // Predicated region
    $region26: #{cross_attention_forward.1} parent=1 // pred_check
      _
    $region27: #{cross_attention_forward.1} parent=1 // pred_check_branch
      %64 = sbr.rel (0) target = $region29
    $region28: #{cross_attention_forward.1} parent=1 // pred_region
      _
    $region29: #{cross_attention_forward.1} parent=1 // pred_fallthru
      _
    // Predicated region
    $region30: #{cross_attention_forward.1} parent=1 // pred_check
      _
    $region31: #{cross_attention_forward.1} parent=1 // pred_check_branch
      %66 = sbr.rel (0) target = $region33
    $region32: #{cross_attention_forward.1} parent=1 // pred_region
      %s68 = ssub.s32 512, 512
      %69 = vsyncadd [#allocation9], %s68
      %s70 = sshll.u32 [#allocation8], 4
      %s71 = int_to_ptr.vmem [resolvable:$true] %s70
      %76 = dma.hbm_to_vmem [thread:$0]  %s7, 512, %s71, [#allocation9], 128, 128, 8
    $region33: #{cross_attention_forward.1} parent=1 // pred_fallthru
      _
    // Predicated region
    $region34: #{cross_attention_forward.1} parent=1 // pred_check
      _
    $region35: #{cross_attention_forward.1} parent=1 // pred_check_branch
      %78 = sbr.rel (0) target = $region37
    $region36: #{cross_attention_forward.1} parent=1 // pred_region
      %s80 = ssub.s32 16, 16
      %81 = vsyncadd [#allocation9], %s80
      %s83 = sshll.u32 [#allocation10], 4
      %s84 = int_to_ptr.vmem [resolvable:$true] %s83
      %86 = dma.hbm_to_vmem [thread:$0]  %s8, 16, %s84, [#allocation9]
    $region37: #{cross_attention_forward.1} parent=1 // pred_fallthru
      _
    // Predicated region
    $region38: #{cross_attention_forward.1} parent=1 // pred_check
      _
    $region39: #{cross_attention_forward.1} parent=1 // pred_check_branch
      %88 = sbr.rel (0) target = $region41
    $region40: #{cross_attention_forward.1} parent=1 // pred_region
      %s90 = ssub.s32 512, 512
      %91 = vsyncadd [#allocation12], %s90
      %s92 = sshll.u32 [#allocation11], 4
      %s93 = int_to_ptr.vmem [resolvable:$true] %s92
      %98 = dma.hbm_to_vmem [thread:$0]  %s9, 512, %s93, [#allocation12], 128, 128, 8
    $region41: #{cross_attention_forward.1} parent=1 // pred_fallthru
      _
    // Predicated region
    $region42: #{cross_attention_forward.1} parent=1 // pred_check
      _
    $region43: #{cross_attention_forward.1} parent=1 // pred_check_branch
      %100 = sbr.rel (0) target = $region45
    $region44: #{cross_attention_forward.1} parent=1 // pred_region
      %s102 = ssub.s32 16, 16
      %103 = vsyncadd [#allocation12], %s102
      %s105 = sshll.u32 [#allocation13], 4
      %s106 = int_to_ptr.vmem [resolvable:$true] %s105
      %108 = dma.hbm_to_vmem [thread:$0]  %s10, 16, %s106, [#allocation12]
    $region45: #{cross_attention_forward.1} parent=1 // pred_fallthru
      _
    // Predicated region
    $region46: #{cross_attention_forward.1} parent=1 // pred_check
      _
    $region47: #{cross_attention_forward.1} parent=1 // pred_check_branch
      %110 = sbr.rel (0) target = $region49
    $region48: #{cross_attention_forward.1} parent=1 // pred_region
      %111 = dma.done [#allocation3], 256
    $region49: #{cross_attention_forward.1} parent=1 // pred_fallthru
      _
    // Predicated region
    $region50: #{cross_attention_forward.1} parent=1 // pred_check
      _
    $region51: #{cross_attention_forward.1} parent=1 // pred_check_branch
      %113 = sbr.rel (0) target = $region53
    $region52: #{cross_attention_forward.1} parent=1 // pred_region
      %114 = dma.done [#allocation6], 512
    $region53: #{cross_attention_forward.1} parent=1 // pred_fallthru
      _
    // Predicated region
    $region54: #{cross_attention_forward.1} parent=1 // pred_check
      _
    $region55: #{cross_attention_forward.1} parent=1 // pred_check_branch
      %116 = sbr.rel (0) target = $region57
    $region56: #{cross_attention_forward.1} parent=1 // pred_region
      %117 = dma.done [#allocation6], 512
    $region57: #{cross_attention_forward.1} parent=1 // pred_fallthru
      _
    // Predicated region
    $region58: #{cross_attention_forward.1} parent=1 // pred_check
      _
    $region59: #{cross_attention_forward.1} parent=1 // pred_check_branch
      %119 = sbr.rel (0) target = $region61
    $region60: #{cross_attention_forward.1} parent=1 // pred_region
      %120 = dma.done [#allocation9], 512
    $region61: #{cross_attention_forward.1} parent=1 // pred_fallthru
      _
    // Predicated region
    $region62: #{cross_attention_forward.1} parent=1 // pred_check
      _
    $region63: #{cross_attention_forward.1} parent=1 // pred_check_branch
      %122 = sbr.rel (0) target = $region65
    $region64: #{cross_attention_forward.1} parent=1 // pred_region
      %123 = dma.done [#allocation9], 16
    $region65: #{cross_attention_forward.1} parent=1 // pred_fallthru
      _
    // Predicated region
    $region66: #{cross_attention_forward.1} parent=1 // pred_check
      _
    $region67: #{cross_attention_forward.1} parent=1 // pred_check_branch
      %125 = sbr.rel (0) target = $region69
    $region68: #{cross_attention_forward.1} parent=1 // pred_region
      %126 = dma.done [#allocation12], 512
    $region69: #{cross_attention_forward.1} parent=1 // pred_fallthru
      _
    // Predicated region
    $region70: #{cross_attention_forward.1} parent=1 // pred_check
      _
    $region71: #{cross_attention_forward.1} parent=1 // pred_check_branch
      %128 = sbr.rel (0) target = $region73
    $region72: #{cross_attention_forward.1} parent=1 // pred_region
      %129 = dma.done [#allocation12], 16
    $region73: #{cross_attention_forward.1} parent=1 // pred_fallthru
      _
    %v130 = vld [vmem:[%s0] sm:$0xff]
    %v131 = vld [vmem:[%s0 + $0x8] sm:$0xff]
    %v132 = vld [vmem:[#allocation2] sm:$0xff]
    %v133 = vld [vmem:[#allocation2 + $0x8] sm:$0xff]
    %v134 = vld [vmem:[#allocation5] sm:$0xff]
    %v135 = vld [vmem:[#allocation5 + $0x8] sm:$0xff]
    %v136 = vld [vmem:[#allocation5 + $0x10] sm:$0xff]
    %v137 = vld [vmem:[#allocation5 + $0x18] sm:$0xff]
    %v138 = vld [vmem:[%s4] sm:$0x1]
    %v140 = vlaneseq
    %v141 = vshrl.u32 %v140, 7
    %v142 = vsub.s32 0, %v141
    %v143 = vrot.slane %v138, %v142
    %vm145 = vcmask 261120
    %v147 = vsel %vm145, %v130, 0
    %v150 = vsel %vm145, %v131, 0
    %152 = vmatprep.subr.mxu0 0.0
    %153 = vmatpush1.msra.mxu0 0.0
    %154 = vmatprep.subr.mxu0 0.0
    %155 = vmatpush1.msra.mxu0 0.0
    %156 = vmatprep.subr.mxu0 0.0
    %157 = vmatpush1.msra.mxu0 0.0
    %158 = vmatprep.subr.mxu0 0.0
    %159 = vmatpush1.msra.mxu0 0.0
    %160 = vmatprep.subr.mxu0 0.0
    %161 = vmatpush1.msra.mxu0 0.0
    %162 = vmatprep.subr.mxu0 0.0
    %163 = vmatpush1.msra.mxu0 0.0
    %164 = vmatprep.subr.mxu0 0.0
    %165 = vmatpush1.msra.mxu0 0.0
    %166 = vmatprep.subr.mxu0 0.0
    %167 = vmatpush1.msra.mxu0 0.0
    %168 = vmatprep.subr.mxu0 0.0
    %169 = vmatpush1.msra.mxu0 0.0
    %170 = vmatprep.subr.mxu0 0.0
    %171 = vmatpush1.msra.mxu0 0.0
    %172 = vmatprep.subr.mxu0 0.0
    %173 = vmatpush1.msra.mxu0 0.0
    %174 = vmatprep.subr.mxu0 0.0
    %175 = vmatpush1.msra.mxu0 0.0
    %176 = vmatprep.subr.mxu0 0.0
    %177 = vmatpush1.msra.mxu0 %v137
    %178 = vmatprep.subr.mxu0 0.0
    %179 = vmatpush1.msra.mxu0 %v136
    %180 = vmatprep.subr.mxu0 0.0
    %181 = vmatpush1.msra.mxu0 %v135
    %182 = vmatprep.subr.mxu0 0.0
    %183 = vmatpush1.msra.mxu0 %v134
    %184 = vmatprep.subr.mxu0 0.0
    %185 = vmatpush2.msra.mxu0 0.0
    %186 = vmatprep.subr.mxu0 0.0
    %187 = vmatpush2.msra.mxu0 0.0
    %188 = vmatprep.subr.mxu0 0.0
    %189 = vmatpush2.msra.mxu0 0.0
    %190 = vmatprep.subr.mxu0 0.0
    %191 = vmatpush2.msra.mxu0 0.0
    %192 = vmatprep.subr.mxu0 0.0
    %193 = vmatpush2.msra.mxu0 0.0
    %194 = vmatprep.subr.mxu0 0.0
    %195 = vmatpush2.msra.mxu0 0.0
    %196 = vmatprep.subr.mxu0 0.0
    %197 = vmatpush2.msra.mxu0 0.0
    %198 = vmatprep.subr.mxu0 0.0
    %199 = vmatpush2.msra.mxu0 0.0
    %200 = vmatprep.subr.mxu0 0.0
    %201 = vmatpush2.msra.mxu0 0.0
    %202 = vmatprep.subr.mxu0 0.0
    %203 = vmatpush2.msra.mxu0 0.0
    %204 = vmatprep.subr.mxu0 0.0
    %205 = vmatpush2.msra.mxu0 0.0
    %206 = vmatprep.subr.mxu0 0.0
    %207 = vmatpush2.msra.mxu0 0.0
    %208 = vmatprep.subr.mxu0 0.0
    %209 = vmatpush2.msra.mxu0 0.0
    %210 = vmatprep.subr.mxu0 0.0
    %211 = vmatpush2.msra.mxu0 0.0
    %212 = vmatprep.subr.mxu0 0.0
    %213 = vmatpush2.msra.mxu0 0.0
    %214 = vmatprep.subr.mxu0 0.0
    %215 = vmatpush2.msra.mxu0 0.0
    %216 = vmatprep.mubr.f32.mxu0 0.0
    %217 = vmatmul.mubr.f32.gmra.mxu0 %v147
    %v218 = vpop.f32.mrf.mxu0
    %v219 = vadd.f32 %v143, %v218
    %v220 = vpop.f32.mrf.mxu0
    %221 = vmatprep.mubr.f32.mxu0 0.0
    %222 = vmatmul.mubr.f32.gmra.mxu0 %v150
    %v223 = vpop.f32.mrf.mxu0
    %v224 = vadd.f32 %v143, %v223
    %v225 = vpop.f32.mrf.mxu0
    %226 = vdwg.mxu0
    %v227 = vld [vmem:[#allocation7] sm:$0xff]
    %v228 = vld [vmem:[#allocation7 + $0x8] sm:$0xff]
    %v229 = vld [vmem:[#allocation7 + $0x10] sm:$0xff]
    %v230 = vld [vmem:[#allocation7 + $0x18] sm:$0xff]
    %v231 = vld [vmem:[%s6] sm:$0x1]
    %v233 = vlaneseq
    %v234 = vshrl.u32 %v233, 7
    %v235 = vsub.s32 0, %v234
    %v236 = vrot.slane %v231, %v235
    %v239 = vsel %vm145, %v132, 0
    %v242 = vsel %vm145, %v133, 0
    %244 = vmatprep.subr.mxu0 0.0
    %245 = vmatpush1.msra.mxu0 0.0
    %246 = vmatprep.subr.mxu0 0.0
    %247 = vmatpush1.msra.mxu0 0.0
    %248 = vmatprep.subr.mxu0 0.0
    %249 = vmatpush1.msra.mxu0 0.0
    %250 = vmatprep.subr.mxu0 0.0
    %251 = vmatpush1.msra.mxu0 0.0
    %252 = vmatprep.subr.mxu0 0.0
    %253 = vmatpush1.msra.mxu0 0.0
    %254 = vmatprep.subr.mxu0 0.0
    %255 = vmatpush1.msra.mxu0 0.0
    %256 = vmatprep.subr.mxu0 0.0
    %257 = vmatpush1.msra.mxu0 0.0
    %258 = vmatprep.subr.mxu0 0.0
    %259 = vmatpush1.msra.mxu0 0.0
    %260 = vmatprep.subr.mxu0 0.0
    %261 = vmatpush1.msra.mxu0 0.0
    %262 = vmatprep.subr.mxu0 0.0
    %263 = vmatpush1.msra.mxu0 0.0
    %264 = vmatprep.subr.mxu0 0.0
    %265 = vmatpush1.msra.mxu0 0.0
    %266 = vmatprep.subr.mxu0 0.0
    %267 = vmatpush1.msra.mxu0 0.0
    %268 = vmatprep.subr.mxu0 0.0
    %269 = vmatpush1.msra.mxu0 %v230
    %270 = vmatprep.subr.mxu0 0.0
    %271 = vmatpush1.msra.mxu0 %v229
    %272 = vmatprep.subr.mxu0 0.0
    %273 = vmatpush1.msra.mxu0 %v228
    %274 = vmatprep.subr.mxu0 0.0
    %275 = vmatpush1.msra.mxu0 %v227
    %276 = vmatprep.subr.mxu0 0.0
    %277 = vmatpush2.msra.mxu0 0.0
    %278 = vmatprep.subr.mxu0 0.0
    %279 = vmatpush2.msra.mxu0 0.0
    %280 = vmatprep.subr.mxu0 0.0
    %281 = vmatpush2.msra.mxu0 0.0
    %282 = vmatprep.subr.mxu0 0.0
    %283 = vmatpush2.msra.mxu0 0.0
    %284 = vmatprep.subr.mxu0 0.0
    %285 = vmatpush2.msra.mxu0 0.0
    %286 = vmatprep.subr.mxu0 0.0
    %287 = vmatpush2.msra.mxu0 0.0
    %288 = vmatprep.subr.mxu0 0.0
    %289 = vmatpush2.msra.mxu0 0.0
    %290 = vmatprep.subr.mxu0 0.0
    %291 = vmatpush2.msra.mxu0 0.0
    %292 = vmatprep.subr.mxu0 0.0
    %293 = vmatpush2.msra.mxu0 0.0
    %294 = vmatprep.subr.mxu0 0.0
    %295 = vmatpush2.msra.mxu0 0.0
    %296 = vmatprep.subr.mxu0 0.0
    %297 = vmatpush2.msra.mxu0 0.0
    %298 = vmatprep.subr.mxu0 0.0
    %299 = vmatpush2.msra.mxu0 0.0
    %300 = vmatprep.subr.mxu0 0.0
    %301 = vmatpush2.msra.mxu0 0.0
    %302 = vmatprep.subr.mxu0 0.0
    %303 = vmatpush2.msra.mxu0 0.0
    %304 = vmatprep.subr.mxu0 0.0
    %305 = vmatpush2.msra.mxu0 0.0
    %306 = vmatprep.subr.mxu0 0.0
    %307 = vmatpush2.msra.mxu0 0.0
    %308 = vmatprep.mubr.f32.mxu0 0.0
    %309 = vmatmul.mubr.f32.gmra.mxu0 %v239
    %v310 = vpop.f32.mrf.mxu0
    %v311 = vadd.f32 %v236, %v310
    %v312 = vpop.f32.mrf.mxu0
    %313 = vmatprep.mubr.f32.mxu0 0.0
    %314 = vmatmul.mubr.f32.gmra.mxu0 %v242
    %v315 = vpop.f32.mrf.mxu0
    %v316 = vadd.f32 %v236, %v315
    %v317 = vpop.f32.mrf.mxu0
    %318 = vdwg.mxu0
    %v319 = vld [vmem:[#allocation8] sm:$0xff]
    %v320 = vld [vmem:[#allocation8 + $0x8] sm:$0xff]
    %v321 = vld [vmem:[#allocation8 + $0x10] sm:$0xff]
    %v322 = vld [vmem:[#allocation8 + $0x18] sm:$0xff]
    %v323 = vld [vmem:[#allocation10] sm:$0x1]
    %v325 = vlaneseq
    %v326 = vshrl.u32 %v325, 7
    %v327 = vsub.s32 0, %v326
    %v328 = vrot.slane %v323, %v327
    %330 = vmatprep.subr.mxu0 0.0
    %331 = vmatpush1.msra.mxu0 0.0
    %332 = vmatprep.subr.mxu0 0.0
    %333 = vmatpush1.msra.mxu0 0.0
    %334 = vmatprep.subr.mxu0 0.0
    %335 = vmatpush1.msra.mxu0 0.0
    %336 = vmatprep.subr.mxu0 0.0
    %337 = vmatpush1.msra.mxu0 0.0
    %338 = vmatprep.subr.mxu0 0.0
    %339 = vmatpush1.msra.mxu0 0.0
    %340 = vmatprep.subr.mxu0 0.0
    %341 = vmatpush1.msra.mxu0 0.0
    %342 = vmatprep.subr.mxu0 0.0
    %343 = vmatpush1.msra.mxu0 0.0
    %344 = vmatprep.subr.mxu0 0.0
    %345 = vmatpush1.msra.mxu0 0.0
    %346 = vmatprep.subr.mxu0 0.0
    %347 = vmatpush1.msra.mxu0 0.0
    %348 = vmatprep.subr.mxu0 0.0
    %349 = vmatpush1.msra.mxu0 0.0
    %350 = vmatprep.subr.mxu0 0.0
    %351 = vmatpush1.msra.mxu0 0.0
    %352 = vmatprep.subr.mxu0 0.0
    %353 = vmatpush1.msra.mxu0 0.0
    %354 = vmatprep.subr.mxu0 0.0
    %355 = vmatpush1.msra.mxu0 %v322
    %356 = vmatprep.subr.mxu0 0.0
    %357 = vmatpush1.msra.mxu0 %v321
    %358 = vmatprep.subr.mxu0 0.0
    %359 = vmatpush1.msra.mxu0 %v320
    %360 = vmatprep.subr.mxu0 0.0
    %361 = vmatpush1.msra.mxu0 %v319
    %362 = vmatprep.subr.mxu0 0.0
    %363 = vmatpush2.msra.mxu0 0.0
    %364 = vmatprep.subr.mxu0 0.0
    %365 = vmatpush2.msra.mxu0 0.0
    %366 = vmatprep.subr.mxu0 0.0
    %367 = vmatpush2.msra.mxu0 0.0
    %368 = vmatprep.subr.mxu0 0.0
    %369 = vmatpush2.msra.mxu0 0.0
    %370 = vmatprep.subr.mxu0 0.0
    %371 = vmatpush2.msra.mxu0 0.0
    %372 = vmatprep.subr.mxu0 0.0
    %373 = vmatpush2.msra.mxu0 0.0
    %374 = vmatprep.subr.mxu0 0.0
    %375 = vmatpush2.msra.mxu0 0.0
    %376 = vmatprep.subr.mxu0 0.0
    %377 = vmatpush2.msra.mxu0 0.0
    %378 = vmatprep.subr.mxu0 0.0
    %379 = vmatpush2.msra.mxu0 0.0
    %380 = vmatprep.subr.mxu0 0.0
    %381 = vmatpush2.msra.mxu0 0.0
    %382 = vmatprep.subr.mxu0 0.0
    %383 = vmatpush2.msra.mxu0 0.0
    %384 = vmatprep.subr.mxu0 0.0
    %385 = vmatpush2.msra.mxu0 0.0
    %386 = vmatprep.subr.mxu0 0.0
    %387 = vmatpush2.msra.mxu0 0.0
    %388 = vmatprep.subr.mxu0 0.0
    %389 = vmatpush2.msra.mxu0 0.0
    %390 = vmatprep.subr.mxu0 0.0
    %391 = vmatpush2.msra.mxu0 0.0
    %392 = vmatprep.subr.mxu0 0.0
    %393 = vmatpush2.msra.mxu0 0.0
    %394 = vmatprep.mubr.f32.mxu0 0.0
    %395 = vmatmul.mubr.f32.gmra.mxu0 %v239
    %v396 = vpop.f32.mrf.mxu0
    %v397 = vadd.f32 %v328, %v396
    %v398 = vpop.f32.mrf.mxu0
    %399 = vmatprep.mubr.f32.mxu0 0.0
    %400 = vmatmul.mubr.f32.gmra.mxu0 %v242
    %v401 = vpop.f32.mrf.mxu0
    %v402 = vadd.f32 %v328, %v401
    %v403 = vpop.f32.mrf.mxu0
    %404 = vdwg.mxu0
    %v405 = vld [vmem:[%s2] sm:$0x1]
    %vm406 = vcmp.ne.s32.totalorder %v405, 0
    %v407 = vsel %vm406, 1, 0
    %v408 = vlaneseq
    %v409 = vshrl.u32 %v408, 7
    %v410 = vsub.s32 0, %v409
    %v411 = vrot.slane %v407, %v410
    %vm412 = vcmp.eq.s32.totalorder %v411, 1
    %vm413 = vcmask 64512
    %v415 = vsel %vm413, %v219, 0
    %v418 = vsel %vm413, %v311, 0
    %420 = vmatprep.subr.mxu0 0.0
    %421 = vmatpush1.xpose.msra.mxu0 0.0
    %422 = vmatprep.subr.mxu0 0.0
    %423 = vmatpush1.xpose.msra.mxu0 0.0
    %424 = vmatprep.subr.mxu0 0.0
    %425 = vmatpush1.xpose.msra.mxu0 0.0
    %426 = vmatprep.subr.mxu0 0.0
    %427 = vmatpush1.xpose.msra.mxu0 0.0
    %428 = vmatprep.subr.mxu0 0.0
    %429 = vmatpush1.xpose.msra.mxu0 0.0
    %430 = vmatprep.subr.mxu0 0.0
    %431 = vmatpush1.xpose.msra.mxu0 0.0
    %432 = vmatprep.subr.mxu0 0.0
    %433 = vmatpush1.xpose.msra.mxu0 0.0
    %434 = vmatprep.subr.mxu0 0.0
    %435 = vmatpush1.xpose.msra.mxu0 0.0
    %436 = vmatprep.subr.mxu0 0.0
    %437 = vmatpush1.xpose.msra.mxu0 0.0
    %438 = vmatprep.subr.mxu0 0.0
    %439 = vmatpush1.xpose.msra.mxu0 0.0
    %440 = vmatprep.subr.mxu0 0.0
    %441 = vmatpush1.xpose.msra.mxu0 0.0
    %442 = vmatprep.subr.mxu0 0.0
    %443 = vmatpush1.xpose.msra.mxu0 0.0
    %444 = vmatprep.subr.mxu0 0.0
    %445 = vmatpush1.xpose.msra.mxu0 0.0
    %446 = vmatprep.subr.mxu0 0.0
    %447 = vmatpush1.xpose.msra.mxu0 0.0
    %448 = vmatprep.subr.mxu0 0.0
    %449 = vmatpush1.xpose.msra.mxu0 0.0
    %450 = vmatprep.subr.mxu0 0.0
    %451 = vmatpush1.xpose.msra.mxu0 %v418
    %452 = vmatprep.subr.mxu0 0.0
    %453 = vmatpush2.xpose.msra.mxu0 0.0
    %454 = vmatprep.subr.mxu0 0.0
    %455 = vmatpush2.xpose.msra.mxu0 0.0
    %456 = vmatprep.subr.mxu0 0.0
    %457 = vmatpush2.xpose.msra.mxu0 0.0
    %458 = vmatprep.subr.mxu0 0.0
    %459 = vmatpush2.xpose.msra.mxu0 0.0
    %460 = vmatprep.subr.mxu0 0.0
    %461 = vmatpush2.xpose.msra.mxu0 0.0
    %462 = vmatprep.subr.mxu0 0.0
    %463 = vmatpush2.xpose.msra.mxu0 0.0
    %464 = vmatprep.subr.mxu0 0.0
    %465 = vmatpush2.xpose.msra.mxu0 0.0
    %466 = vmatprep.subr.mxu0 0.0
    %467 = vmatpush2.xpose.msra.mxu0 0.0
    %468 = vmatprep.subr.mxu0 0.0
    %469 = vmatpush2.xpose.msra.mxu0 0.0
    %470 = vmatprep.subr.mxu0 0.0
    %471 = vmatpush2.xpose.msra.mxu0 0.0
    %472 = vmatprep.subr.mxu0 0.0
    %473 = vmatpush2.xpose.msra.mxu0 0.0
    %474 = vmatprep.subr.mxu0 0.0
    %475 = vmatpush2.xpose.msra.mxu0 0.0
    %476 = vmatprep.subr.mxu0 0.0
    %477 = vmatpush2.xpose.msra.mxu0 0.0
    %478 = vmatprep.subr.mxu0 0.0
    %479 = vmatpush2.xpose.msra.mxu0 0.0
    %480 = vmatprep.subr.mxu0 0.0
    %481 = vmatpush2.xpose.msra.mxu0 0.0
    %482 = vmatprep.subr.mxu0 0.0
    %483 = vmatpush2.xpose.msra.mxu0 0.0
    %484 = vmatprep.mubr.f32.mxu0 0.0
    %485 = vmatmul.mubr.f32.gmra.mxu0 %v415
    %v486 = vpop.f32.mrf.mxu0
    %v487 = vadd.f32 0.0, %v486
    %v488 = vpop.f32.mrf.mxu0
    %489 = vdwg.mxu0
    %v490 = vmul.f32 %v487, 0.35355338
    %v491 = vsel %vm412, %v490, -10000.0
    %v492 = vsel %vm413, %v491, -inf
    %493 = vmax.xlane.f32.xlu0 %v492
    %v494 = vpop.xlane.xlu0 %493
    %v495 = vsub.f32 %v491, %v494
    %v496 = vmul.f32 %v495, 1.442695
    %v497 = vpow.pop %v496
    %v498 = vsel %vm413, %v497, 0.0
    %499 = vadd.xlane.f32.xlu0 %v498
    %v500 = vpop.xlane.xlu0 %499
    %v501 = vrcp.pop %v500
    %v502 = vmul.f32 %v497, %v501
    %v504 = vsel %vm413, %v502, 0
    %506 = vmatprep.subr.mxu0 0.0
    %507 = vmatpush1.msra.mxu0 0.0
    %508 = vmatprep.subr.mxu0 0.0
    %509 = vmatpush1.msra.mxu0 0.0
    %510 = vmatprep.subr.mxu0 0.0
    %511 = vmatpush1.msra.mxu0 0.0
    %512 = vmatprep.subr.mxu0 0.0
    %513 = vmatpush1.msra.mxu0 0.0
    %514 = vmatprep.subr.mxu0 0.0
    %515 = vmatpush1.msra.mxu0 0.0
    %516 = vmatprep.subr.mxu0 0.0
    %517 = vmatpush1.msra.mxu0 0.0
    %518 = vmatprep.subr.mxu0 0.0
    %519 = vmatpush1.msra.mxu0 0.0
    %520 = vmatprep.subr.mxu0 0.0
    %521 = vmatpush1.msra.mxu0 0.0
    %522 = vmatprep.subr.mxu0 0.0
    %523 = vmatpush1.msra.mxu0 0.0
    %524 = vmatprep.subr.mxu0 0.0
    %525 = vmatpush1.msra.mxu0 0.0
    %526 = vmatprep.subr.mxu0 0.0
    %527 = vmatpush1.msra.mxu0 0.0
    %528 = vmatprep.subr.mxu0 0.0
    %529 = vmatpush1.msra.mxu0 0.0
    %530 = vmatprep.subr.mxu0 0.0
    %531 = vmatpush1.msra.mxu0 0.0
    %532 = vmatprep.subr.mxu0 0.0
    %533 = vmatpush1.msra.mxu0 0.0
    %534 = vmatprep.subr.mxu0 0.0
    %535 = vmatpush1.msra.mxu0 0.0
    %536 = vmatprep.subr.mxu0 0.0
    %537 = vmatpush1.msra.mxu0 %v397
    %538 = vmatprep.subr.mxu0 0.0
    %539 = vmatpush2.msra.mxu0 0.0
    %540 = vmatprep.subr.mxu0 0.0
    %541 = vmatpush2.msra.mxu0 0.0
    %542 = vmatprep.subr.mxu0 0.0
    %543 = vmatpush2.msra.mxu0 0.0
    %544 = vmatprep.subr.mxu0 0.0
    %545 = vmatpush2.msra.mxu0 0.0
    %546 = vmatprep.subr.mxu0 0.0
    %547 = vmatpush2.msra.mxu0 0.0
    %548 = vmatprep.subr.mxu0 0.0
    %549 = vmatpush2.msra.mxu0 0.0
    %550 = vmatprep.subr.mxu0 0.0
    %551 = vmatpush2.msra.mxu0 0.0
    %552 = vmatprep.subr.mxu0 0.0
    %553 = vmatpush2.msra.mxu0 0.0
    %554 = vmatprep.subr.mxu0 0.0
    %555 = vmatpush2.msra.mxu0 0.0
    %556 = vmatprep.subr.mxu0 0.0
    %557 = vmatpush2.msra.mxu0 0.0
    %558 = vmatprep.subr.mxu0 0.0
    %559 = vmatpush2.msra.mxu0 0.0
    %560 = vmatprep.subr.mxu0 0.0
    %561 = vmatpush2.msra.mxu0 0.0
    %562 = vmatprep.subr.mxu0 0.0
    %563 = vmatpush2.msra.mxu0 0.0
    %564 = vmatprep.subr.mxu0 0.0
    %565 = vmatpush2.msra.mxu0 0.0
    %566 = vmatprep.subr.mxu0 0.0
    %567 = vmatpush2.msra.mxu0 0.0
    %568 = vmatprep.subr.mxu0 0.0
    %569 = vmatpush2.msra.mxu0 0.0
    %570 = vmatprep.mubr.f32.mxu0 0.0
    %571 = vmatmul.mubr.f32.gmra.mxu0 %v504
    %v572 = vpop.f32.mrf.mxu0
    %v573 = vadd.f32 0.0, %v572
    %v574 = vpop.f32.mrf.mxu0
    %575 = vdwg.mxu0
    %v576 = vld [vmem:[#allocation11] sm:$0xff]
    %577 = vrot.lane.b32.xlu0 %v219, 120
    %v578 = vpop.permute.xlu0 %577
    %579 = vrot.lane.b32.xlu0 %v311, 120
    %v580 = vpop.permute.xlu0 %579
    %v581 = vsel %vm413, %v578, 0
    %v583 = vsel %vm413, %v580, 0
    %585 = vmatprep.subr.mxu0 0.0
    %586 = vmatpush1.xpose.msra.mxu0 0.0
    %587 = vmatprep.subr.mxu0 0.0
    %588 = vmatpush1.xpose.msra.mxu0 0.0
    %589 = vmatprep.subr.mxu0 0.0
    %590 = vmatpush1.xpose.msra.mxu0 0.0
    %591 = vmatprep.subr.mxu0 0.0
    %592 = vmatpush1.xpose.msra.mxu0 0.0
    %593 = vmatprep.subr.mxu0 0.0
    %594 = vmatpush1.xpose.msra.mxu0 0.0
    %595 = vmatprep.subr.mxu0 0.0
    %596 = vmatpush1.xpose.msra.mxu0 0.0
    %597 = vmatprep.subr.mxu0 0.0
    %598 = vmatpush1.xpose.msra.mxu0 0.0
    %599 = vmatprep.subr.mxu0 0.0
    %600 = vmatpush1.xpose.msra.mxu0 0.0
    %601 = vmatprep.subr.mxu0 0.0
    %602 = vmatpush1.xpose.msra.mxu0 0.0
    %603 = vmatprep.subr.mxu0 0.0
    %604 = vmatpush1.xpose.msra.mxu0 0.0
    %605 = vmatprep.subr.mxu0 0.0
    %606 = vmatpush1.xpose.msra.mxu0 0.0
    %607 = vmatprep.subr.mxu0 0.0
    %608 = vmatpush1.xpose.msra.mxu0 0.0
    %609 = vmatprep.subr.mxu0 0.0
    %610 = vmatpush1.xpose.msra.mxu0 0.0
    %611 = vmatprep.subr.mxu0 0.0
    %612 = vmatpush1.xpose.msra.mxu0 0.0
    %613 = vmatprep.subr.mxu0 0.0
    %614 = vmatpush1.xpose.msra.mxu0 0.0
    %615 = vmatprep.subr.mxu0 0.0
    %616 = vmatpush1.xpose.msra.mxu0 %v583
    %617 = vmatprep.subr.mxu0 0.0
    %618 = vmatpush2.xpose.msra.mxu0 0.0
    %619 = vmatprep.subr.mxu0 0.0
    %620 = vmatpush2.xpose.msra.mxu0 0.0
    %621 = vmatprep.subr.mxu0 0.0
    %622 = vmatpush2.xpose.msra.mxu0 0.0
    %623 = vmatprep.subr.mxu0 0.0
    %624 = vmatpush2.xpose.msra.mxu0 0.0
    %625 = vmatprep.subr.mxu0 0.0
    %626 = vmatpush2.xpose.msra.mxu0 0.0
    %627 = vmatprep.subr.mxu0 0.0
    %628 = vmatpush2.xpose.msra.mxu0 0.0
    %629 = vmatprep.subr.mxu0 0.0
    %630 = vmatpush2.xpose.msra.mxu0 0.0
    %631 = vmatprep.subr.mxu0 0.0
    %632 = vmatpush2.xpose.msra.mxu0 0.0
    %633 = vmatprep.subr.mxu0 0.0
    %634 = vmatpush2.xpose.msra.mxu0 0.0
    %635 = vmatprep.subr.mxu0 0.0
    %636 = vmatpush2.xpose.msra.mxu0 0.0
    %637 = vmatprep.subr.mxu0 0.0
    %638 = vmatpush2.xpose.msra.mxu0 0.0
    %639 = vmatprep.subr.mxu0 0.0
    %640 = vmatpush2.xpose.msra.mxu0 0.0
    %641 = vmatprep.subr.mxu0 0.0
    %642 = vmatpush2.xpose.msra.mxu0 0.0
    %643 = vmatprep.subr.mxu0 0.0
    %644 = vmatpush2.xpose.msra.mxu0 0.0
    %645 = vmatprep.subr.mxu0 0.0
    %646 = vmatpush2.xpose.msra.mxu0 0.0
    %647 = vmatprep.subr.mxu0 0.0
    %648 = vmatpush2.xpose.msra.mxu0 0.0
    %649 = vmatprep.mubr.f32.mxu0 0.0
    %650 = vmatmul.mubr.f32.gmra.mxu0 %v581
    %v651 = vpop.f32.mrf.mxu0
    %v652 = vadd.f32 0.0, %v651
    %v653 = vpop.f32.mrf.mxu0
    %654 = vdwg.mxu0
    %v655 = vmul.f32 %v652, 0.35355338
    %v656 = vsel %vm412, %v655, -10000.0
    %v657 = vsel %vm413, %v656, -inf
    %658 = vmax.xlane.f32.xlu0 %v657
    %v659 = vpop.xlane.xlu0 %658
    %v660 = vsub.f32 %v656, %v659
    %v661 = vmul.f32 %v660, 1.442695
    %v662 = vpow.pop %v661
    %v663 = vsel %vm413, %v662, 0.0
    %664 = vadd.xlane.f32.xlu0 %v663
    %v665 = vpop.xlane.xlu0 %664
    %v666 = vrcp.pop %v665
    %v667 = vmul.f32 %v662, %v666
    %669 = vrot.lane.b32.xlu0 %v397, 120
    %v670 = vpop.permute.xlu0 %669
    %v673 = vsel %vm413, %v667, 0
    %675 = vmatprep.subr.mxu0 0.0
    %676 = vmatpush1.msra.mxu0 0.0
    %677 = vmatprep.subr.mxu0 0.0
    %678 = vmatpush1.msra.mxu0 0.0
    %679 = vmatprep.subr.mxu0 0.0
    %680 = vmatpush1.msra.mxu0 0.0
    %681 = vmatprep.subr.mxu0 0.0
    %682 = vmatpush1.msra.mxu0 0.0
    %683 = vmatprep.subr.mxu0 0.0
    %684 = vmatpush1.msra.mxu0 0.0
    %685 = vmatprep.subr.mxu0 0.0
    %686 = vmatpush1.msra.mxu0 0.0
    %687 = vmatprep.subr.mxu0 0.0
    %688 = vmatpush1.msra.mxu0 0.0
    %689 = vmatprep.subr.mxu0 0.0
    %690 = vmatpush1.msra.mxu0 0.0
    %691 = vmatprep.subr.mxu0 0.0
    %692 = vmatpush1.msra.mxu0 0.0
    %693 = vmatprep.subr.mxu0 0.0
    %694 = vmatpush1.msra.mxu0 0.0
    %695 = vmatprep.subr.mxu0 0.0
    %696 = vmatpush1.msra.mxu0 0.0
    %697 = vmatprep.subr.mxu0 0.0
    %698 = vmatpush1.msra.mxu0 0.0
    %699 = vmatprep.subr.mxu0 0.0
    %700 = vmatpush1.msra.mxu0 0.0
    %701 = vmatprep.subr.mxu0 0.0
    %702 = vmatpush1.msra.mxu0 0.0
    %703 = vmatprep.subr.mxu0 0.0
    %704 = vmatpush1.msra.mxu0 0.0
    %705 = vmatprep.subr.mxu0 0.0
    %706 = vmatpush1.msra.mxu0 %v670
    %707 = vmatprep.subr.mxu0 0.0
    %708 = vmatpush2.msra.mxu0 0.0
    %709 = vmatprep.subr.mxu0 0.0
    %710 = vmatpush2.msra.mxu0 0.0
    %711 = vmatprep.subr.mxu0 0.0
    %712 = vmatpush2.msra.mxu0 0.0
    %713 = vmatprep.subr.mxu0 0.0
    %714 = vmatpush2.msra.mxu0 0.0
    %715 = vmatprep.subr.mxu0 0.0
    %716 = vmatpush2.msra.mxu0 0.0
    %717 = vmatprep.subr.mxu0 0.0
    %718 = vmatpush2.msra.mxu0 0.0
    %719 = vmatprep.subr.mxu0 0.0
    %720 = vmatpush2.msra.mxu0 0.0
    %721 = vmatprep.subr.mxu0 0.0
    %722 = vmatpush2.msra.mxu0 0.0
    %723 = vmatprep.subr.mxu0 0.0
    %724 = vmatpush2.msra.mxu0 0.0
    %725 = vmatprep.subr.mxu0 0.0
    %726 = vmatpush2.msra.mxu0 0.0
    %727 = vmatprep.subr.mxu0 0.0
    %728 = vmatpush2.msra.mxu0 0.0
    %729 = vmatprep.subr.mxu0 0.0
    %730 = vmatpush2.msra.mxu0 0.0
    %731 = vmatprep.subr.mxu0 0.0
    %732 = vmatpush2.msra.mxu0 0.0
    %733 = vmatprep.subr.mxu0 0.0
    %734 = vmatpush2.msra.mxu0 0.0
    %735 = vmatprep.subr.mxu0 0.0
    %736 = vmatpush2.msra.mxu0 0.0
    %737 = vmatprep.subr.mxu0 0.0
    %738 = vmatpush2.msra.mxu0 0.0
    %739 = vmatprep.mubr.f32.mxu0 0.0
    %740 = vmatmul.mubr.f32.gmra.mxu0 %v673
    %v741 = vpop.f32.mrf.mxu0
    %v742 = vadd.f32 0.0, %v741
    %v743 = vpop.f32.mrf.mxu0
    %744 = vdwg.mxu0
    %v745 = vld [vmem:[#allocation11 + $0x8] sm:$0xff]
    %v747 = vsel %vm413, %v742, 0
    %749 = vmatprep.subr.mxu0 0.0
    %750 = vmatpush1.msra.mxu0 0.0
    %751 = vmatprep.subr.mxu0 0.0
    %752 = vmatpush1.msra.mxu0 0.0
    %753 = vmatprep.subr.mxu0 0.0
    %754 = vmatpush1.msra.mxu0 0.0
    %755 = vmatprep.subr.mxu0 0.0
    %756 = vmatpush1.msra.mxu0 0.0
    %757 = vmatprep.subr.mxu0 0.0
    %758 = vmatpush1.msra.mxu0 0.0
    %759 = vmatprep.subr.mxu0 0.0
    %760 = vmatpush1.msra.mxu0 0.0
    %761 = vmatprep.subr.mxu0 0.0
    %762 = vmatpush1.msra.mxu0 0.0
    %763 = vmatprep.subr.mxu0 0.0
    %764 = vmatpush1.msra.mxu0 0.0
    %765 = vmatprep.subr.mxu0 0.0
    %766 = vmatpush1.msra.mxu0 0.0
    %767 = vmatprep.subr.mxu0 0.0
    %768 = vmatpush1.msra.mxu0 0.0
    %769 = vmatprep.subr.mxu0 0.0
    %770 = vmatpush1.msra.mxu0 0.0
    %771 = vmatprep.subr.mxu0 0.0
    %772 = vmatpush1.msra.mxu0 0.0
    %773 = vmatprep.subr.mxu0 0.0
    %774 = vmatpush1.msra.mxu0 0.0
    %775 = vmatprep.subr.mxu0 0.0
    %776 = vmatpush1.msra.mxu0 0.0
    %777 = vmatprep.subr.mxu0 0.0
    %778 = vmatpush1.msra.mxu0 0.0
    %779 = vmatprep.subr.mxu0 0.0
    %780 = vmatpush1.msra.mxu0 %v745
    %781 = vmatprep.subr.mxu0 0.0
    %782 = vmatpush2.msra.mxu0 0.0
    %783 = vmatprep.subr.mxu0 0.0
    %784 = vmatpush2.msra.mxu0 0.0
    %785 = vmatprep.subr.mxu0 0.0
    %786 = vmatpush2.msra.mxu0 0.0
    %787 = vmatprep.subr.mxu0 0.0
    %788 = vmatpush2.msra.mxu0 0.0
    %789 = vmatprep.subr.mxu0 0.0
    %790 = vmatpush2.msra.mxu0 0.0
    %791 = vmatprep.subr.mxu0 0.0
    %792 = vmatpush2.msra.mxu0 0.0
    %793 = vmatprep.subr.mxu0 0.0
    %794 = vmatpush2.msra.mxu0 0.0
    %795 = vmatprep.subr.mxu0 0.0
    %796 = vmatpush2.msra.mxu0 0.0
    %797 = vmatprep.subr.mxu0 0.0
    %798 = vmatpush2.msra.mxu0 0.0
    %799 = vmatprep.subr.mxu0 0.0
    %800 = vmatpush2.msra.mxu0 0.0
    %801 = vmatprep.subr.mxu0 0.0
    %802 = vmatpush2.msra.mxu0 0.0
    %803 = vmatprep.subr.mxu0 0.0
    %804 = vmatpush2.msra.mxu0 0.0
    %805 = vmatprep.subr.mxu0 0.0
    %806 = vmatpush2.msra.mxu0 0.0
    %807 = vmatprep.subr.mxu0 0.0
    %808 = vmatpush2.msra.mxu0 0.0
    %809 = vmatprep.subr.mxu0 0.0
    %810 = vmatpush2.msra.mxu0 0.0
    %811 = vmatprep.subr.mxu0 0.0
    %812 = vmatpush2.msra.mxu0 0.0
    %813 = vmatprep.mubr.f32.mxu0 0.0
    %814 = vmatmul.mubr.f32.gmra.mxu0 %v747
    %v815 = vpop.f32.mrf.mxu0
    %v816 = vadd.f32 0.0, %v815
    %v817 = vpop.f32.mrf.mxu0
    %818 = vdwg.mxu0
    %v820 = vsel %vm413, %v573, 0
    %822 = vmatprep.subr.mxu0 0.0
    %823 = vmatpush1.msra.mxu0 0.0
    %824 = vmatprep.subr.mxu0 0.0
    %825 = vmatpush1.msra.mxu0 0.0
    %826 = vmatprep.subr.mxu0 0.0
    %827 = vmatpush1.msra.mxu0 0.0
    %828 = vmatprep.subr.mxu0 0.0
    %829 = vmatpush1.msra.mxu0 0.0
    %830 = vmatprep.subr.mxu0 0.0
    %831 = vmatpush1.msra.mxu0 0.0
    %832 = vmatprep.subr.mxu0 0.0
    %833 = vmatpush1.msra.mxu0 0.0
    %834 = vmatprep.subr.mxu0 0.0
    %835 = vmatpush1.msra.mxu0 0.0
    %836 = vmatprep.subr.mxu0 0.0
    %837 = vmatpush1.msra.mxu0 0.0
    %838 = vmatprep.subr.mxu0 0.0
    %839 = vmatpush1.msra.mxu0 0.0
    %840 = vmatprep.subr.mxu0 0.0
    %841 = vmatpush1.msra.mxu0 0.0
    %842 = vmatprep.subr.mxu0 0.0
    %843 = vmatpush1.msra.mxu0 0.0
    %844 = vmatprep.subr.mxu0 0.0
    %845 = vmatpush1.msra.mxu0 0.0
    %846 = vmatprep.subr.mxu0 0.0
    %847 = vmatpush1.msra.mxu0 0.0
    %848 = vmatprep.subr.mxu0 0.0
    %849 = vmatpush1.msra.mxu0 0.0
    %850 = vmatprep.subr.mxu0 0.0
    %851 = vmatpush1.msra.mxu0 0.0
    %852 = vmatprep.subr.mxu0 0.0
    %853 = vmatpush1.msra.mxu0 %v576
    %854 = vmatprep.subr.mxu0 0.0
    %855 = vmatpush2.msra.mxu0 0.0
    %856 = vmatprep.subr.mxu0 0.0
    %857 = vmatpush2.msra.mxu0 0.0
    %858 = vmatprep.subr.mxu0 0.0
    %859 = vmatpush2.msra.mxu0 0.0
    %860 = vmatprep.subr.mxu0 0.0
    %861 = vmatpush2.msra.mxu0 0.0
    %862 = vmatprep.subr.mxu0 0.0
    %863 = vmatpush2.msra.mxu0 0.0
    %864 = vmatprep.subr.mxu0 0.0
    %865 = vmatpush2.msra.mxu0 0.0
    %866 = vmatprep.subr.mxu0 0.0
    %867 = vmatpush2.msra.mxu0 0.0
    %868 = vmatprep.subr.mxu0 0.0
    %869 = vmatpush2.msra.mxu0 0.0
    %870 = vmatprep.subr.mxu0 0.0
    %871 = vmatpush2.msra.mxu0 0.0
    %872 = vmatprep.subr.mxu0 0.0
    %873 = vmatpush2.msra.mxu0 0.0
    %874 = vmatprep.subr.mxu0 0.0
    %875 = vmatpush2.msra.mxu0 0.0
    %876 = vmatprep.subr.mxu0 0.0
    %877 = vmatpush2.msra.mxu0 0.0
    %878 = vmatprep.subr.mxu0 0.0
    %879 = vmatpush2.msra.mxu0 0.0
    %880 = vmatprep.subr.mxu0 0.0
    %881 = vmatpush2.msra.mxu0 0.0
    %882 = vmatprep.subr.mxu0 0.0
    %883 = vmatpush2.msra.mxu0 0.0
    %884 = vmatprep.subr.mxu0 0.0
    %885 = vmatpush2.msra.mxu0 0.0
    %886 = vmatprep.mubr.f32.mxu0 0.0
    %887 = vmatmul.mubr.f32.gmra.mxu0 %v820
    %v888 = vpop.f32.mrf.mxu0
    %v889 = vadd.f32 %v816, %v888
    %v890 = vpop.f32.mrf.mxu0
    %891 = vdwg.mxu0
    %892 = vrot.lane.b32.xlu0 %v219, 112
    %v893 = vpop.permute.xlu0 %892
    %894 = vrot.lane.b32.xlu0 %v311, 112
    %v895 = vpop.permute.xlu0 %894
    %v896 = vsel %vm413, %v893, 0
    %v898 = vsel %vm413, %v895, 0
    %900 = vmatprep.subr.mxu0 0.0
    %901 = vmatpush1.xpose.msra.mxu0 0.0
    %902 = vmatprep.subr.mxu0 0.0
    %903 = vmatpush1.xpose.msra.mxu0 0.0
    %904 = vmatprep.subr.mxu0 0.0
    %905 = vmatpush1.xpose.msra.mxu0 0.0
    %906 = vmatprep.subr.mxu0 0.0
    %907 = vmatpush1.xpose.msra.mxu0 0.0
    %908 = vmatprep.subr.mxu0 0.0
    %909 = vmatpush1.xpose.msra.mxu0 0.0
    %910 = vmatprep.subr.mxu0 0.0
    %911 = vmatpush1.xpose.msra.mxu0 0.0
    %912 = vmatprep.subr.mxu0 0.0
    %913 = vmatpush1.xpose.msra.mxu0 0.0
    %914 = vmatprep.subr.mxu0 0.0
    %915 = vmatpush1.xpose.msra.mxu0 0.0
    %916 = vmatprep.subr.mxu0 0.0
    %917 = vmatpush1.xpose.msra.mxu0 0.0
    %918 = vmatprep.subr.mxu0 0.0
    %919 = vmatpush1.xpose.msra.mxu0 0.0
    %920 = vmatprep.subr.mxu0 0.0
    %921 = vmatpush1.xpose.msra.mxu0 0.0
    %922 = vmatprep.subr.mxu0 0.0
    %923 = vmatpush1.xpose.msra.mxu0 0.0
    %924 = vmatprep.subr.mxu0 0.0
    %925 = vmatpush1.xpose.msra.mxu0 0.0
    %926 = vmatprep.subr.mxu0 0.0
    %927 = vmatpush1.xpose.msra.mxu0 0.0
    %928 = vmatprep.subr.mxu0 0.0
    %929 = vmatpush1.xpose.msra.mxu0 0.0
    %930 = vmatprep.subr.mxu0 0.0
    %931 = vmatpush1.xpose.msra.mxu0 %v898
    %932 = vmatprep.subr.mxu0 0.0
    %933 = vmatpush2.xpose.msra.mxu0 0.0
    %934 = vmatprep.subr.mxu0 0.0
    %935 = vmatpush2.xpose.msra.mxu0 0.0
    %936 = vmatprep.subr.mxu0 0.0
    %937 = vmatpush2.xpose.msra.mxu0 0.0
    %938 = vmatprep.subr.mxu0 0.0
    %939 = vmatpush2.xpose.msra.mxu0 0.0
    %940 = vmatprep.subr.mxu0 0.0
    %941 = vmatpush2.xpose.msra.mxu0 0.0
    %942 = vmatprep.subr.mxu0 0.0
    %943 = vmatpush2.xpose.msra.mxu0 0.0
    %944 = vmatprep.subr.mxu0 0.0
    %945 = vmatpush2.xpose.msra.mxu0 0.0
    %946 = vmatprep.subr.mxu0 0.0
    %947 = vmatpush2.xpose.msra.mxu0 0.0
    %948 = vmatprep.subr.mxu0 0.0
    %949 = vmatpush2.xpose.msra.mxu0 0.0
    %950 = vmatprep.subr.mxu0 0.0
    %951 = vmatpush2.xpose.msra.mxu0 0.0
    %952 = vmatprep.subr.mxu0 0.0
    %953 = vmatpush2.xpose.msra.mxu0 0.0
    %954 = vmatprep.subr.mxu0 0.0
    %955 = vmatpush2.xpose.msra.mxu0 0.0
    %956 = vmatprep.subr.mxu0 0.0
    %957 = vmatpush2.xpose.msra.mxu0 0.0
    %958 = vmatprep.subr.mxu0 0.0
    %959 = vmatpush2.xpose.msra.mxu0 0.0
    %960 = vmatprep.subr.mxu0 0.0
    %961 = vmatpush2.xpose.msra.mxu0 0.0
    %962 = vmatprep.subr.mxu0 0.0
    %963 = vmatpush2.xpose.msra.mxu0 0.0
    %964 = vmatprep.mubr.f32.mxu0 0.0
    %965 = vmatmul.mubr.f32.gmra.mxu0 %v896
    %v966 = vpop.f32.mrf.mxu0
    %v967 = vadd.f32 0.0, %v966
    %v968 = vpop.f32.mrf.mxu0
    %969 = vdwg.mxu0
    %v970 = vmul.f32 %v967, 0.35355338
    %v971 = vsel %vm412, %v970, -10000.0
    %v972 = vsel %vm413, %v971, -inf
    %973 = vmax.xlane.f32.xlu0 %v972
    %v974 = vpop.xlane.xlu0 %973
    %v975 = vsub.f32 %v971, %v974
    %v976 = vmul.f32 %v975, 1.442695
    %v977 = vpow.pop %v976
    %v978 = vsel %vm413, %v977, 0.0
    %979 = vadd.xlane.f32.xlu0 %v978
    %v980 = vpop.xlane.xlu0 %979
    %v981 = vrcp.pop %v980
    %v982 = vmul.f32 %v977, %v981
    %983 = vrot.lane.b32.xlu0 %v397, 112
    %v984 = vpop.permute.xlu0 %983
    %v987 = vsel %vm413, %v982, 0
    %989 = vmatprep.subr.mxu0 0.0
    %990 = vmatpush1.msra.mxu0 0.0
    %991 = vmatprep.subr.mxu0 0.0
    %992 = vmatpush1.msra.mxu0 0.0
    %993 = vmatprep.subr.mxu0 0.0
    %994 = vmatpush1.msra.mxu0 0.0
    %995 = vmatprep.subr.mxu0 0.0
    %996 = vmatpush1.msra.mxu0 0.0
    %997 = vmatprep.subr.mxu0 0.0
    %998 = vmatpush1.msra.mxu0 0.0
    %999 = vmatprep.subr.mxu0 0.0
    %1000 = vmatpush1.msra.mxu0 0.0
    %1001 = vmatprep.subr.mxu0 0.0
    %1002 = vmatpush1.msra.mxu0 0.0
    %1003 = vmatprep.subr.mxu0 0.0
    %1004 = vmatpush1.msra.mxu0 0.0
    %1005 = vmatprep.subr.mxu0 0.0
    %1006 = vmatpush1.msra.mxu0 0.0
    %1007 = vmatprep.subr.mxu0 0.0
    %1008 = vmatpush1.msra.mxu0 0.0
    %1009 = vmatprep.subr.mxu0 0.0
    %1010 = vmatpush1.msra.mxu0 0.0
    %1011 = vmatprep.subr.mxu0 0.0
    %1012 = vmatpush1.msra.mxu0 0.0
    %1013 = vmatprep.subr.mxu0 0.0
    %1014 = vmatpush1.msra.mxu0 0.0
    %1015 = vmatprep.subr.mxu0 0.0
    %1016 = vmatpush1.msra.mxu0 0.0
    %1017 = vmatprep.subr.mxu0 0.0
    %1018 = vmatpush1.msra.mxu0 0.0
    %1019 = vmatprep.subr.mxu0 0.0
    %1020 = vmatpush1.msra.mxu0 %v984
    %1021 = vmatprep.subr.mxu0 0.0
    %1022 = vmatpush2.msra.mxu0 0.0
    %1023 = vmatprep.subr.mxu0 0.0
    %1024 = vmatpush2.msra.mxu0 0.0
    %1025 = vmatprep.subr.mxu0 0.0
    %1026 = vmatpush2.msra.mxu0 0.0
    %1027 = vmatprep.subr.mxu0 0.0
    %1028 = vmatpush2.msra.mxu0 0.0
    %1029 = vmatprep.subr.mxu0 0.0
    %1030 = vmatpush2.msra.mxu0 0.0
    %1031 = vmatprep.subr.mxu0 0.0
    %1032 = vmatpush2.msra.mxu0 0.0
    %1033 = vmatprep.subr.mxu0 0.0
    %1034 = vmatpush2.msra.mxu0 0.0
    %1035 = vmatprep.subr.mxu0 0.0
    %1036 = vmatpush2.msra.mxu0 0.0
    %1037 = vmatprep.subr.mxu0 0.0
    %1038 = vmatpush2.msra.mxu0 0.0
    %1039 = vmatprep.subr.mxu0 0.0
    %1040 = vmatpush2.msra.mxu0 0.0
    %1041 = vmatprep.subr.mxu0 0.0
    %1042 = vmatpush2.msra.mxu0 0.0
    %1043 = vmatprep.subr.mxu0 0.0
    %1044 = vmatpush2.msra.mxu0 0.0
    %1045 = vmatprep.subr.mxu0 0.0
    %1046 = vmatpush2.msra.mxu0 0.0
    %1047 = vmatprep.subr.mxu0 0.0
    %1048 = vmatpush2.msra.mxu0 0.0
    %1049 = vmatprep.subr.mxu0 0.0
    %1050 = vmatpush2.msra.mxu0 0.0
    %1051 = vmatprep.subr.mxu0 0.0
    %1052 = vmatpush2.msra.mxu0 0.0
    %1053 = vmatprep.mubr.f32.mxu0 0.0
    %1054 = vmatmul.mubr.f32.gmra.mxu0 %v987
    %v1055 = vpop.f32.mrf.mxu0
    %v1056 = vadd.f32 0.0, %v1055
    %v1057 = vpop.f32.mrf.mxu0
    %1058 = vdwg.mxu0
    %v1059 = vld [vmem:[#allocation11 + $0x10] sm:$0xff]
    %v1061 = vsel %vm413, %v1056, 0
    %1063 = vmatprep.subr.mxu0 0.0
    %1064 = vmatpush1.msra.mxu0 0.0
    %1065 = vmatprep.subr.mxu0 0.0
    %1066 = vmatpush1.msra.mxu0 0.0
    %1067 = vmatprep.subr.mxu0 0.0
    %1068 = vmatpush1.msra.mxu0 0.0
    %1069 = vmatprep.subr.mxu0 0.0
    %1070 = vmatpush1.msra.mxu0 0.0
    %1071 = vmatprep.subr.mxu0 0.0
    %1072 = vmatpush1.msra.mxu0 0.0
    %1073 = vmatprep.subr.mxu0 0.0
    %1074 = vmatpush1.msra.mxu0 0.0
    %1075 = vmatprep.subr.mxu0 0.0
    %1076 = vmatpush1.msra.mxu0 0.0
    %1077 = vmatprep.subr.mxu0 0.0
    %1078 = vmatpush1.msra.mxu0 0.0
    %1079 = vmatprep.subr.mxu0 0.0
    %1080 = vmatpush1.msra.mxu0 0.0
    %1081 = vmatprep.subr.mxu0 0.0
    %1082 = vmatpush1.msra.mxu0 0.0
    %1083 = vmatprep.subr.mxu0 0.0
    %1084 = vmatpush1.msra.mxu0 0.0
    %1085 = vmatprep.subr.mxu0 0.0
    %1086 = vmatpush1.msra.mxu0 0.0
    %1087 = vmatprep.subr.mxu0 0.0
    %1088 = vmatpush1.msra.mxu0 0.0
    %1089 = vmatprep.subr.mxu0 0.0
    %1090 = vmatpush1.msra.mxu0 0.0
    %1091 = vmatprep.subr.mxu0 0.0
    %1092 = vmatpush1.msra.mxu0 0.0
    %1093 = vmatprep.subr.mxu0 0.0
    %1094 = vmatpush1.msra.mxu0 %v1059
    %1095 = vmatprep.subr.mxu0 0.0
    %1096 = vmatpush2.msra.mxu0 0.0
    %1097 = vmatprep.subr.mxu0 0.0
    %1098 = vmatpush2.msra.mxu0 0.0
    %1099 = vmatprep.subr.mxu0 0.0
    %1100 = vmatpush2.msra.mxu0 0.0
    %1101 = vmatprep.subr.mxu0 0.0
    %1102 = vmatpush2.msra.mxu0 0.0
    %1103 = vmatprep.subr.mxu0 0.0
    %1104 = vmatpush2.msra.mxu0 0.0
    %1105 = vmatprep.subr.mxu0 0.0
    %1106 = vmatpush2.msra.mxu0 0.0
    %1107 = vmatprep.subr.mxu0 0.0
    %1108 = vmatpush2.msra.mxu0 0.0
    %1109 = vmatprep.subr.mxu0 0.0
    %1110 = vmatpush2.msra.mxu0 0.0
    %1111 = vmatprep.subr.mxu0 0.0
    %1112 = vmatpush2.msra.mxu0 0.0
    %1113 = vmatprep.subr.mxu0 0.0
    %1114 = vmatpush2.msra.mxu0 0.0
    %1115 = vmatprep.subr.mxu0 0.0
    %1116 = vmatpush2.msra.mxu0 0.0
    %1117 = vmatprep.subr.mxu0 0.0
    %1118 = vmatpush2.msra.mxu0 0.0
    %1119 = vmatprep.subr.mxu0 0.0
    %1120 = vmatpush2.msra.mxu0 0.0
    %1121 = vmatprep.subr.mxu0 0.0
    %1122 = vmatpush2.msra.mxu0 0.0
    %1123 = vmatprep.subr.mxu0 0.0
    %1124 = vmatpush2.msra.mxu0 0.0
    %1125 = vmatprep.subr.mxu0 0.0
    %1126 = vmatpush2.msra.mxu0 0.0
    %1127 = vmatprep.mubr.f32.mxu0 0.0
    %1128 = vmatmul.mubr.f32.gmra.mxu0 %v1061
    %v1129 = vpop.f32.mrf.mxu0
    %v1130 = vadd.f32 0.0, %v1129
    %v1131 = vpop.f32.mrf.mxu0
    %1132 = vdwg.mxu0
    %v1133 = vadd.f32 %v889, %v1130
    %1134 = vrot.lane.b32.xlu0 %v219, 104
    %v1135 = vpop.permute.xlu0 %1134
    %1136 = vrot.lane.b32.xlu0 %v311, 104
    %v1137 = vpop.permute.xlu0 %1136
    %v1138 = vsel %vm413, %v1135, 0
    %v1140 = vsel %vm413, %v1137, 0
    %1142 = vmatprep.subr.mxu0 0.0
    %1143 = vmatpush1.xpose.msra.mxu0 0.0
    %1144 = vmatprep.subr.mxu0 0.0
    %1145 = vmatpush1.xpose.msra.mxu0 0.0
    %1146 = vmatprep.subr.mxu0 0.0
    %1147 = vmatpush1.xpose.msra.mxu0 0.0
    %1148 = vmatprep.subr.mxu0 0.0
    %1149 = vmatpush1.xpose.msra.mxu0 0.0
    %1150 = vmatprep.subr.mxu0 0.0
    %1151 = vmatpush1.xpose.msra.mxu0 0.0
    %1152 = vmatprep.subr.mxu0 0.0
    %1153 = vmatpush1.xpose.msra.mxu0 0.0
    %1154 = vmatprep.subr.mxu0 0.0
    %1155 = vmatpush1.xpose.msra.mxu0 0.0
    %1156 = vmatprep.subr.mxu0 0.0
    %1157 = vmatpush1.xpose.msra.mxu0 0.0
    %1158 = vmatprep.subr.mxu0 0.0
    %1159 = vmatpush1.xpose.msra.mxu0 0.0
    %1160 = vmatprep.subr.mxu0 0.0
    %1161 = vmatpush1.xpose.msra.mxu0 0.0
    %1162 = vmatprep.subr.mxu0 0.0
    %1163 = vmatpush1.xpose.msra.mxu0 0.0
    %1164 = vmatprep.subr.mxu0 0.0
    %1165 = vmatpush1.xpose.msra.mxu0 0.0
    %1166 = vmatprep.subr.mxu0 0.0
    %1167 = vmatpush1.xpose.msra.mxu0 0.0
    %1168 = vmatprep.subr.mxu0 0.0
    %1169 = vmatpush1.xpose.msra.mxu0 0.0
    %1170 = vmatprep.subr.mxu0 0.0
    %1171 = vmatpush1.xpose.msra.mxu0 0.0
    %1172 = vmatprep.subr.mxu0 0.0
    %1173 = vmatpush1.xpose.msra.mxu0 %v1140
    %1174 = vmatprep.subr.mxu0 0.0
    %1175 = vmatpush2.xpose.msra.mxu0 0.0
    %1176 = vmatprep.subr.mxu0 0.0
    %1177 = vmatpush2.xpose.msra.mxu0 0.0
    %1178 = vmatprep.subr.mxu0 0.0
    %1179 = vmatpush2.xpose.msra.mxu0 0.0
    %1180 = vmatprep.subr.mxu0 0.0
    %1181 = vmatpush2.xpose.msra.mxu0 0.0
    %1182 = vmatprep.subr.mxu0 0.0
    %1183 = vmatpush2.xpose.msra.mxu0 0.0
    %1184 = vmatprep.subr.mxu0 0.0
    %1185 = vmatpush2.xpose.msra.mxu0 0.0
    %1186 = vmatprep.subr.mxu0 0.0
    %1187 = vmatpush2.xpose.msra.mxu0 0.0
    %1188 = vmatprep.subr.mxu0 0.0
    %1189 = vmatpush2.xpose.msra.mxu0 0.0
    %1190 = vmatprep.subr.mxu0 0.0
    %1191 = vmatpush2.xpose.msra.mxu0 0.0
    %1192 = vmatprep.subr.mxu0 0.0
    %1193 = vmatpush2.xpose.msra.mxu0 0.0
    %1194 = vmatprep.subr.mxu0 0.0
    %1195 = vmatpush2.xpose.msra.mxu0 0.0
    %1196 = vmatprep.subr.mxu0 0.0
    %1197 = vmatpush2.xpose.msra.mxu0 0.0
    %1198 = vmatprep.subr.mxu0 0.0
    %1199 = vmatpush2.xpose.msra.mxu0 0.0
    %1200 = vmatprep.subr.mxu0 0.0
    %1201 = vmatpush2.xpose.msra.mxu0 0.0
    %1202 = vmatprep.subr.mxu0 0.0
    %1203 = vmatpush2.xpose.msra.mxu0 0.0
    %1204 = vmatprep.subr.mxu0 0.0
    %1205 = vmatpush2.xpose.msra.mxu0 0.0
    %1206 = vmatprep.mubr.f32.mxu0 0.0
    %1207 = vmatmul.mubr.f32.gmra.mxu0 %v1138
    %v1208 = vpop.f32.mrf.mxu0
    %v1209 = vadd.f32 0.0, %v1208
    %v1210 = vpop.f32.mrf.mxu0
    %1211 = vdwg.mxu0
    %v1212 = vmul.f32 %v1209, 0.35355338
    %v1213 = vsel %vm412, %v1212, -10000.0
    %v1214 = vsel %vm413, %v1213, -inf
    %1215 = vmax.xlane.f32.xlu0 %v1214
    %v1216 = vpop.xlane.xlu0 %1215
    %v1217 = vsub.f32 %v1213, %v1216
    %v1218 = vmul.f32 %v1217, 1.442695
    %v1219 = vpow.pop %v1218
    %v1220 = vsel %vm413, %v1219, 0.0
    %1221 = vadd.xlane.f32.xlu0 %v1220
    %v1222 = vpop.xlane.xlu0 %1221
    %v1223 = vrcp.pop %v1222
    %v1224 = vmul.f32 %v1219, %v1223
    %1225 = vrot.lane.b32.xlu0 %v397, 104
    %v1226 = vpop.permute.xlu0 %1225
    %v1229 = vsel %vm413, %v1224, 0
    %1231 = vmatprep.subr.mxu0 0.0
    %1232 = vmatpush1.msra.mxu0 0.0
    %1233 = vmatprep.subr.mxu0 0.0
    %1234 = vmatpush1.msra.mxu0 0.0
    %1235 = vmatprep.subr.mxu0 0.0
    %1236 = vmatpush1.msra.mxu0 0.0
    %1237 = vmatprep.subr.mxu0 0.0
    %1238 = vmatpush1.msra.mxu0 0.0
    %1239 = vmatprep.subr.mxu0 0.0
    %1240 = vmatpush1.msra.mxu0 0.0
    %1241 = vmatprep.subr.mxu0 0.0
    %1242 = vmatpush1.msra.mxu0 0.0
    %1243 = vmatprep.subr.mxu0 0.0
    %1244 = vmatpush1.msra.mxu0 0.0
    %1245 = vmatprep.subr.mxu0 0.0
    %1246 = vmatpush1.msra.mxu0 0.0
    %1247 = vmatprep.subr.mxu0 0.0
    %1248 = vmatpush1.msra.mxu0 0.0
    %1249 = vmatprep.subr.mxu0 0.0
    %1250 = vmatpush1.msra.mxu0 0.0
    %1251 = vmatprep.subr.mxu0 0.0
    %1252 = vmatpush1.msra.mxu0 0.0
    %1253 = vmatprep.subr.mxu0 0.0
    %1254 = vmatpush1.msra.mxu0 0.0
    %1255 = vmatprep.subr.mxu0 0.0
    %1256 = vmatpush1.msra.mxu0 0.0
    %1257 = vmatprep.subr.mxu0 0.0
    %1258 = vmatpush1.msra.mxu0 0.0
    %1259 = vmatprep.subr.mxu0 0.0
    %1260 = vmatpush1.msra.mxu0 0.0
    %1261 = vmatprep.subr.mxu0 0.0
    %1262 = vmatpush1.msra.mxu0 %v1226
    %1263 = vmatprep.subr.mxu0 0.0
    %1264 = vmatpush2.msra.mxu0 0.0
    %1265 = vmatprep.subr.mxu0 0.0
    %1266 = vmatpush2.msra.mxu0 0.0
    %1267 = vmatprep.subr.mxu0 0.0
    %1268 = vmatpush2.msra.mxu0 0.0
    %1269 = vmatprep.subr.mxu0 0.0
    %1270 = vmatpush2.msra.mxu0 0.0
    %1271 = vmatprep.subr.mxu0 0.0
    %1272 = vmatpush2.msra.mxu0 0.0
    %1273 = vmatprep.subr.mxu0 0.0
    %1274 = vmatpush2.msra.mxu0 0.0
    %1275 = vmatprep.subr.mxu0 0.0
    %1276 = vmatpush2.msra.mxu0 0.0
    %1277 = vmatprep.subr.mxu0 0.0
    %1278 = vmatpush2.msra.mxu0 0.0
    %1279 = vmatprep.subr.mxu0 0.0
    %1280 = vmatpush2.msra.mxu0 0.0
    %1281 = vmatprep.subr.mxu0 0.0
    %1282 = vmatpush2.msra.mxu0 0.0
    %1283 = vmatprep.subr.mxu0 0.0
    %1284 = vmatpush2.msra.mxu0 0.0
    %1285 = vmatprep.subr.mxu0 0.0
    %1286 = vmatpush2.msra.mxu0 0.0
    %1287 = vmatprep.subr.mxu0 0.0
    %1288 = vmatpush2.msra.mxu0 0.0
    %1289 = vmatprep.subr.mxu0 0.0
    %1290 = vmatpush2.msra.mxu0 0.0
    %1291 = vmatprep.subr.mxu0 0.0
    %1292 = vmatpush2.msra.mxu0 0.0
    %1293 = vmatprep.subr.mxu0 0.0
    %1294 = vmatpush2.msra.mxu0 0.0
    %1295 = vmatprep.mubr.f32.mxu0 0.0
    %1296 = vmatmul.mubr.f32.gmra.mxu0 %v1229
    %v1297 = vpop.f32.mrf.mxu0
    %v1298 = vadd.f32 0.0, %v1297
    %v1299 = vpop.f32.mrf.mxu0
    %1300 = vdwg.mxu0
    %v1301 = vld [vmem:[#allocation11 + $0x18] sm:$0xff]
    %v1303 = vsel %vm413, %v1298, 0
    %1305 = vmatprep.subr.mxu0 0.0
    %1306 = vmatpush1.msra.mxu0 0.0
    %1307 = vmatprep.subr.mxu0 0.0
    %1308 = vmatpush1.msra.mxu0 0.0
    %1309 = vmatprep.subr.mxu0 0.0
    %1310 = vmatpush1.msra.mxu0 0.0
    %1311 = vmatprep.subr.mxu0 0.0
    %1312 = vmatpush1.msra.mxu0 0.0
    %1313 = vmatprep.subr.mxu0 0.0
    %1314 = vmatpush1.msra.mxu0 0.0
    %1315 = vmatprep.subr.mxu0 0.0
    %1316 = vmatpush1.msra.mxu0 0.0
    %1317 = vmatprep.subr.mxu0 0.0
    %1318 = vmatpush1.msra.mxu0 0.0
    %1319 = vmatprep.subr.mxu0 0.0
    %1320 = vmatpush1.msra.mxu0 0.0
    %1321 = vmatprep.subr.mxu0 0.0
    %1322 = vmatpush1.msra.mxu0 0.0
    %1323 = vmatprep.subr.mxu0 0.0
    %1324 = vmatpush1.msra.mxu0 0.0
    %1325 = vmatprep.subr.mxu0 0.0
    %1326 = vmatpush1.msra.mxu0 0.0
    %1327 = vmatprep.subr.mxu0 0.0
    %1328 = vmatpush1.msra.mxu0 0.0
    %1329 = vmatprep.subr.mxu0 0.0
    %1330 = vmatpush1.msra.mxu0 0.0
    %1331 = vmatprep.subr.mxu0 0.0
    %1332 = vmatpush1.msra.mxu0 0.0
    %1333 = vmatprep.subr.mxu0 0.0
    %1334 = vmatpush1.msra.mxu0 0.0
    %1335 = vmatprep.subr.mxu0 0.0
    %1336 = vmatpush1.msra.mxu0 %v1301
    %1337 = vmatprep.subr.mxu0 0.0
    %1338 = vmatpush2.msra.mxu0 0.0
    %1339 = vmatprep.subr.mxu0 0.0
    %1340 = vmatpush2.msra.mxu0 0.0
    %1341 = vmatprep.subr.mxu0 0.0
    %1342 = vmatpush2.msra.mxu0 0.0
    %1343 = vmatprep.subr.mxu0 0.0
    %1344 = vmatpush2.msra.mxu0 0.0
    %1345 = vmatprep.subr.mxu0 0.0
    %1346 = vmatpush2.msra.mxu0 0.0
    %1347 = vmatprep.subr.mxu0 0.0
    %1348 = vmatpush2.msra.mxu0 0.0
    %1349 = vmatprep.subr.mxu0 0.0
    %1350 = vmatpush2.msra.mxu0 0.0
    %1351 = vmatprep.subr.mxu0 0.0
    %1352 = vmatpush2.msra.mxu0 0.0
    %1353 = vmatprep.subr.mxu0 0.0
    %1354 = vmatpush2.msra.mxu0 0.0
    %1355 = vmatprep.subr.mxu0 0.0
    %1356 = vmatpush2.msra.mxu0 0.0
    %1357 = vmatprep.subr.mxu0 0.0
    %1358 = vmatpush2.msra.mxu0 0.0
    %1359 = vmatprep.subr.mxu0 0.0
    %1360 = vmatpush2.msra.mxu0 0.0
    %1361 = vmatprep.subr.mxu0 0.0
    %1362 = vmatpush2.msra.mxu0 0.0
    %1363 = vmatprep.subr.mxu0 0.0
    %1364 = vmatpush2.msra.mxu0 0.0
    %1365 = vmatprep.subr.mxu0 0.0
    %1366 = vmatpush2.msra.mxu0 0.0
    %1367 = vmatprep.subr.mxu0 0.0
    %1368 = vmatpush2.msra.mxu0 0.0
    %1369 = vmatprep.mubr.f32.mxu0 0.0
    %1370 = vmatmul.mubr.f32.gmra.mxu0 %v1303
    %v1371 = vpop.f32.mrf.mxu0
    %v1372 = vadd.f32 0.0, %v1371
    %v1373 = vpop.f32.mrf.mxu0
    %1374 = vdwg.mxu0
    %v1375 = vadd.f32 %v1133, %v1372
    %v1376 = vld [vmem:[#allocation13] sm:$0x1]
    %v1378 = vlaneseq
    %v1379 = vshrl.u32 %v1378, 7
    %v1380 = vsub.s32 0, %v1379
    %v1381 = vrot.slane %v1376, %v1380
    %v1383 = vadd.f32 %v1375, %v1381
    %1384 = vst.msk [vmem:[#allocation14] sm:$0xff] %vm145, %v1383
    %s1385 = scalar_lea.vmem %s2, 1
    %v1386 = vld [vmem:[%s1385] sm:$0x1]
    %vm1387 = vcmp.ne.s32.totalorder %v1386, 0
    %v1388 = vsel %vm1387, 1, 0
    %v1389 = vlaneseq
    %v1390 = vshrl.u32 %v1389, 7
    %v1391 = vsub.s32 0, %v1390
    %v1392 = vrot.slane %v1388, %v1391
    %vm1393 = vcmp.eq.s32.totalorder %v1392, 1
    %v1395 = vsel %vm413, %v224, 0
    %v1398 = vsel %vm413, %v316, 0
    %1400 = vmatprep.subr.mxu0 0.0
    %1401 = vmatpush1.xpose.msra.mxu0 0.0
    %1402 = vmatprep.subr.mxu0 0.0
    %1403 = vmatpush1.xpose.msra.mxu0 0.0
    %1404 = vmatprep.subr.mxu0 0.0
    %1405 = vmatpush1.xpose.msra.mxu0 0.0
    %1406 = vmatprep.subr.mxu0 0.0
    %1407 = vmatpush1.xpose.msra.mxu0 0.0
    %1408 = vmatprep.subr.mxu0 0.0
    %1409 = vmatpush1.xpose.msra.mxu0 0.0
    %1410 = vmatprep.subr.mxu0 0.0
    %1411 = vmatpush1.xpose.msra.mxu0 0.0
    %1412 = vmatprep.subr.mxu0 0.0
    %1413 = vmatpush1.xpose.msra.mxu0 0.0
    %1414 = vmatprep.subr.mxu0 0.0
    %1415 = vmatpush1.xpose.msra.mxu0 0.0
    %1416 = vmatprep.subr.mxu0 0.0
    %1417 = vmatpush1.xpose.msra.mxu0 0.0
    %1418 = vmatprep.subr.mxu0 0.0
    %1419 = vmatpush1.xpose.msra.mxu0 0.0
    %1420 = vmatprep.subr.mxu0 0.0
    %1421 = vmatpush1.xpose.msra.mxu0 0.0
    %1422 = vmatprep.subr.mxu0 0.0
    %1423 = vmatpush1.xpose.msra.mxu0 0.0
    %1424 = vmatprep.subr.mxu0 0.0
    %1425 = vmatpush1.xpose.msra.mxu0 0.0
    %1426 = vmatprep.subr.mxu0 0.0
    %1427 = vmatpush1.xpose.msra.mxu0 0.0
    %1428 = vmatprep.subr.mxu0 0.0
    %1429 = vmatpush1.xpose.msra.mxu0 0.0
    %1430 = vmatprep.subr.mxu0 0.0
    %1431 = vmatpush1.xpose.msra.mxu0 %v1398
    %1432 = vmatprep.subr.mxu0 0.0
    %1433 = vmatpush2.xpose.msra.mxu0 0.0
    %1434 = vmatprep.subr.mxu0 0.0
    %1435 = vmatpush2.xpose.msra.mxu0 0.0
    %1436 = vmatprep.subr.mxu0 0.0
    %1437 = vmatpush2.xpose.msra.mxu0 0.0
    %1438 = vmatprep.subr.mxu0 0.0
    %1439 = vmatpush2.xpose.msra.mxu0 0.0
    %1440 = vmatprep.subr.mxu0 0.0
    %1441 = vmatpush2.xpose.msra.mxu0 0.0
    %1442 = vmatprep.subr.mxu0 0.0
    %1443 = vmatpush2.xpose.msra.mxu0 0.0
    %1444 = vmatprep.subr.mxu0 0.0
    %1445 = vmatpush2.xpose.msra.mxu0 0.0
    %1446 = vmatprep.subr.mxu0 0.0
    %1447 = vmatpush2.xpose.msra.mxu0 0.0
    %1448 = vmatprep.subr.mxu0 0.0
    %1449 = vmatpush2.xpose.msra.mxu0 0.0
    %1450 = vmatprep.subr.mxu0 0.0
    %1451 = vmatpush2.xpose.msra.mxu0 0.0
    %1452 = vmatprep.subr.mxu0 0.0
    %1453 = vmatpush2.xpose.msra.mxu0 0.0
    %1454 = vmatprep.subr.mxu0 0.0
    %1455 = vmatpush2.xpose.msra.mxu0 0.0
    %1456 = vmatprep.subr.mxu0 0.0
    %1457 = vmatpush2.xpose.msra.mxu0 0.0
    %1458 = vmatprep.subr.mxu0 0.0
    %1459 = vmatpush2.xpose.msra.mxu0 0.0
    %1460 = vmatprep.subr.mxu0 0.0
    %1461 = vmatpush2.xpose.msra.mxu0 0.0
    %1462 = vmatprep.subr.mxu0 0.0
    %1463 = vmatpush2.xpose.msra.mxu0 0.0
    %1464 = vmatprep.mubr.f32.mxu0 0.0
    %1465 = vmatmul.mubr.f32.gmra.mxu0 %v1395
    %v1466 = vpop.f32.mrf.mxu0
    %v1467 = vadd.f32 0.0, %v1466
    %v1468 = vpop.f32.mrf.mxu0
    %1469 = vdwg.mxu0
    %v1470 = vmul.f32 %v1467, 0.35355338
    %v1471 = vsel %vm1393, %v1470, -10000.0
    %v1472 = vsel %vm413, %v1471, -inf
    %1473 = vmax.xlane.f32.xlu0 %v1472
    %v1474 = vpop.xlane.xlu0 %1473
    %v1475 = vsub.f32 %v1471, %v1474
    %v1476 = vmul.f32 %v1475, 1.442695
    %v1477 = vpow.pop %v1476
    %v1478 = vsel %vm413, %v1477, 0.0
    %1479 = vadd.xlane.f32.xlu0 %v1478
    %v1480 = vpop.xlane.xlu0 %1479
    %v1481 = vrcp.pop %v1480
    %v1482 = vmul.f32 %v1477, %v1481
    %v1484 = vsel %vm413, %v1482, 0
    %1486 = vmatprep.subr.mxu0 0.0
    %1487 = vmatpush1.msra.mxu0 0.0
    %1488 = vmatprep.subr.mxu0 0.0
    %1489 = vmatpush1.msra.mxu0 0.0
    %1490 = vmatprep.subr.mxu0 0.0
    %1491 = vmatpush1.msra.mxu0 0.0
    %1492 = vmatprep.subr.mxu0 0.0
    %1493 = vmatpush1.msra.mxu0 0.0
    %1494 = vmatprep.subr.mxu0 0.0
    %1495 = vmatpush1.msra.mxu0 0.0
    %1496 = vmatprep.subr.mxu0 0.0
    %1497 = vmatpush1.msra.mxu0 0.0
    %1498 = vmatprep.subr.mxu0 0.0
    %1499 = vmatpush1.msra.mxu0 0.0
    %1500 = vmatprep.subr.mxu0 0.0
    %1501 = vmatpush1.msra.mxu0 0.0
    %1502 = vmatprep.subr.mxu0 0.0
    %1503 = vmatpush1.msra.mxu0 0.0
    %1504 = vmatprep.subr.mxu0 0.0
    %1505 = vmatpush1.msra.mxu0 0.0
    %1506 = vmatprep.subr.mxu0 0.0
    %1507 = vmatpush1.msra.mxu0 0.0
    %1508 = vmatprep.subr.mxu0 0.0
    %1509 = vmatpush1.msra.mxu0 0.0
    %1510 = vmatprep.subr.mxu0 0.0
    %1511 = vmatpush1.msra.mxu0 0.0
    %1512 = vmatprep.subr.mxu0 0.0
    %1513 = vmatpush1.msra.mxu0 0.0
    %1514 = vmatprep.subr.mxu0 0.0
    %1515 = vmatpush1.msra.mxu0 0.0
    %1516 = vmatprep.subr.mxu0 0.0
    %1517 = vmatpush1.msra.mxu0 %v402
    %1518 = vmatprep.subr.mxu0 0.0
    %1519 = vmatpush2.msra.mxu0 0.0
    %1520 = vmatprep.subr.mxu0 0.0
    %1521 = vmatpush2.msra.mxu0 0.0
    %1522 = vmatprep.subr.mxu0 0.0
    %1523 = vmatpush2.msra.mxu0 0.0
    %1524 = vmatprep.subr.mxu0 0.0
    %1525 = vmatpush2.msra.mxu0 0.0
    %1526 = vmatprep.subr.mxu0 0.0
    %1527 = vmatpush2.msra.mxu0 0.0
    %1528 = vmatprep.subr.mxu0 0.0
    %1529 = vmatpush2.msra.mxu0 0.0
    %1530 = vmatprep.subr.mxu0 0.0
    %1531 = vmatpush2.msra.mxu0 0.0
    %1532 = vmatprep.subr.mxu0 0.0
    %1533 = vmatpush2.msra.mxu0 0.0
    %1534 = vmatprep.subr.mxu0 0.0
    %1535 = vmatpush2.msra.mxu0 0.0
    %1536 = vmatprep.subr.mxu0 0.0
    %1537 = vmatpush2.msra.mxu0 0.0
    %1538 = vmatprep.subr.mxu0 0.0
    %1539 = vmatpush2.msra.mxu0 0.0
    %1540 = vmatprep.subr.mxu0 0.0
    %1541 = vmatpush2.msra.mxu0 0.0
    %1542 = vmatprep.subr.mxu0 0.0
    %1543 = vmatpush2.msra.mxu0 0.0
    %1544 = vmatprep.subr.mxu0 0.0
    %1545 = vmatpush2.msra.mxu0 0.0
    %1546 = vmatprep.subr.mxu0 0.0
    %1547 = vmatpush2.msra.mxu0 0.0
    %1548 = vmatprep.subr.mxu0 0.0
    %1549 = vmatpush2.msra.mxu0 0.0
    %1550 = vmatprep.mubr.f32.mxu0 0.0
    %1551 = vmatmul.mubr.f32.gmra.mxu0 %v1484
    %v1552 = vpop.f32.mrf.mxu0
    %v1553 = vadd.f32 0.0, %v1552
    %v1554 = vpop.f32.mrf.mxu0
    %1555 = vdwg.mxu0
    %v1556 = vld [vmem:[#allocation11] sm:$0xff]
    %1557 = vrot.lane.b32.xlu0 %v224, 120
    %v1558 = vpop.permute.xlu0 %1557
    %1559 = vrot.lane.b32.xlu0 %v316, 120
    %v1560 = vpop.permute.xlu0 %1559
    %v1561 = vsel %vm413, %v1558, 0
    %v1563 = vsel %vm413, %v1560, 0
    %1565 = vmatprep.subr.mxu0 0.0
    %1566 = vmatpush1.xpose.msra.mxu0 0.0
    %1567 = vmatprep.subr.mxu0 0.0
    %1568 = vmatpush1.xpose.msra.mxu0 0.0
    %1569 = vmatprep.subr.mxu0 0.0
    %1570 = vmatpush1.xpose.msra.mxu0 0.0
    %1571 = vmatprep.subr.mxu0 0.0
    %1572 = vmatpush1.xpose.msra.mxu0 0.0
    %1573 = vmatprep.subr.mxu0 0.0
    %1574 = vmatpush1.xpose.msra.mxu0 0.0
    %1575 = vmatprep.subr.mxu0 0.0
    %1576 = vmatpush1.xpose.msra.mxu0 0.0
    %1577 = vmatprep.subr.mxu0 0.0
    %1578 = vmatpush1.xpose.msra.mxu0 0.0
    %1579 = vmatprep.subr.mxu0 0.0
    %1580 = vmatpush1.xpose.msra.mxu0 0.0
    %1581 = vmatprep.subr.mxu0 0.0
    %1582 = vmatpush1.xpose.msra.mxu0 0.0
    %1583 = vmatprep.subr.mxu0 0.0
    %1584 = vmatpush1.xpose.msra.mxu0 0.0
    %1585 = vmatprep.subr.mxu0 0.0
    %1586 = vmatpush1.xpose.msra.mxu0 0.0
    %1587 = vmatprep.subr.mxu0 0.0
    %1588 = vmatpush1.xpose.msra.mxu0 0.0
    %1589 = vmatprep.subr.mxu0 0.0
    %1590 = vmatpush1.xpose.msra.mxu0 0.0
    %1591 = vmatprep.subr.mxu0 0.0
    %1592 = vmatpush1.xpose.msra.mxu0 0.0
    %1593 = vmatprep.subr.mxu0 0.0
    %1594 = vmatpush1.xpose.msra.mxu0 0.0
    %1595 = vmatprep.subr.mxu0 0.0
    %1596 = vmatpush1.xpose.msra.mxu0 %v1563
    %1597 = vmatprep.subr.mxu0 0.0
    %1598 = vmatpush2.xpose.msra.mxu0 0.0
    %1599 = vmatprep.subr.mxu0 0.0
    %1600 = vmatpush2.xpose.msra.mxu0 0.0
    %1601 = vmatprep.subr.mxu0 0.0
    %1602 = vmatpush2.xpose.msra.mxu0 0.0
    %1603 = vmatprep.subr.mxu0 0.0
    %1604 = vmatpush2.xpose.msra.mxu0 0.0
    %1605 = vmatprep.subr.mxu0 0.0
    %1606 = vmatpush2.xpose.msra.mxu0 0.0
    %1607 = vmatprep.subr.mxu0 0.0
    %1608 = vmatpush2.xpose.msra.mxu0 0.0
    %1609 = vmatprep.subr.mxu0 0.0
    %1610 = vmatpush2.xpose.msra.mxu0 0.0
    %1611 = vmatprep.subr.mxu0 0.0
    %1612 = vmatpush2.xpose.msra.mxu0 0.0
    %1613 = vmatprep.subr.mxu0 0.0
    %1614 = vmatpush2.xpose.msra.mxu0 0.0
    %1615 = vmatprep.subr.mxu0 0.0
    %1616 = vmatpush2.xpose.msra.mxu0 0.0
    %1617 = vmatprep.subr.mxu0 0.0
    %1618 = vmatpush2.xpose.msra.mxu0 0.0
    %1619 = vmatprep.subr.mxu0 0.0
    %1620 = vmatpush2.xpose.msra.mxu0 0.0
    %1621 = vmatprep.subr.mxu0 0.0
    %1622 = vmatpush2.xpose.msra.mxu0 0.0
    %1623 = vmatprep.subr.mxu0 0.0
    %1624 = vmatpush2.xpose.msra.mxu0 0.0
    %1625 = vmatprep.subr.mxu0 0.0
    %1626 = vmatpush2.xpose.msra.mxu0 0.0
    %1627 = vmatprep.subr.mxu0 0.0
    %1628 = vmatpush2.xpose.msra.mxu0 0.0
    %1629 = vmatprep.mubr.f32.mxu0 0.0
    %1630 = vmatmul.mubr.f32.gmra.mxu0 %v1561
    %v1631 = vpop.f32.mrf.mxu0
    %v1632 = vadd.f32 0.0, %v1631
    %v1633 = vpop.f32.mrf.mxu0
    %1634 = vdwg.mxu0
    %v1635 = vmul.f32 %v1632, 0.35355338
    %v1636 = vsel %vm1393, %v1635, -10000.0
    %v1637 = vsel %vm413, %v1636, -inf
    %1638 = vmax.xlane.f32.xlu0 %v1637
    %v1639 = vpop.xlane.xlu0 %1638
    %v1640 = vsub.f32 %v1636, %v1639
    %v1641 = vmul.f32 %v1640, 1.442695
    %v1642 = vpow.pop %v1641
    %v1643 = vsel %vm413, %v1642, 0.0
    %1644 = vadd.xlane.f32.xlu0 %v1643
    %v1645 = vpop.xlane.xlu0 %1644
    %v1646 = vrcp.pop %v1645
    %v1647 = vmul.f32 %v1642, %v1646
    %1649 = vrot.lane.b32.xlu0 %v402, 120
    %v1650 = vpop.permute.xlu0 %1649
    %v1653 = vsel %vm413, %v1647, 0
    %1655 = vmatprep.subr.mxu0 0.0
    %1656 = vmatpush1.msra.mxu0 0.0
    %1657 = vmatprep.subr.mxu0 0.0
    %1658 = vmatpush1.msra.mxu0 0.0
    %1659 = vmatprep.subr.mxu0 0.0
    %1660 = vmatpush1.msra.mxu0 0.0
    %1661 = vmatprep.subr.mxu0 0.0
    %1662 = vmatpush1.msra.mxu0 0.0
    %1663 = vmatprep.subr.mxu0 0.0
    %1664 = vmatpush1.msra.mxu0 0.0
    %1665 = vmatprep.subr.mxu0 0.0
    %1666 = vmatpush1.msra.mxu0 0.0
    %1667 = vmatprep.subr.mxu0 0.0
    %1668 = vmatpush1.msra.mxu0 0.0
    %1669 = vmatprep.subr.mxu0 0.0
    %1670 = vmatpush1.msra.mxu0 0.0
    %1671 = vmatprep.subr.mxu0 0.0
    %1672 = vmatpush1.msra.mxu0 0.0
    %1673 = vmatprep.subr.mxu0 0.0
    %1674 = vmatpush1.msra.mxu0 0.0
    %1675 = vmatprep.subr.mxu0 0.0
    %1676 = vmatpush1.msra.mxu0 0.0
    %1677 = vmatprep.subr.mxu0 0.0
    %1678 = vmatpush1.msra.mxu0 0.0
    %1679 = vmatprep.subr.mxu0 0.0
    %1680 = vmatpush1.msra.mxu0 0.0
    %1681 = vmatprep.subr.mxu0 0.0
    %1682 = vmatpush1.msra.mxu0 0.0
    %1683 = vmatprep.subr.mxu0 0.0
    %1684 = vmatpush1.msra.mxu0 0.0
    %1685 = vmatprep.subr.mxu0 0.0
    %1686 = vmatpush1.msra.mxu0 %v1650
    %1687 = vmatprep.subr.mxu0 0.0
    %1688 = vmatpush2.msra.mxu0 0.0
    %1689 = vmatprep.subr.mxu0 0.0
    %1690 = vmatpush2.msra.mxu0 0.0
    %1691 = vmatprep.subr.mxu0 0.0
    %1692 = vmatpush2.msra.mxu0 0.0
    %1693 = vmatprep.subr.mxu0 0.0
    %1694 = vmatpush2.msra.mxu0 0.0
    %1695 = vmatprep.subr.mxu0 0.0
    %1696 = vmatpush2.msra.mxu0 0.0
    %1697 = vmatprep.subr.mxu0 0.0
    %1698 = vmatpush2.msra.mxu0 0.0
    %1699 = vmatprep.subr.mxu0 0.0
    %1700 = vmatpush2.msra.mxu0 0.0
    %1701 = vmatprep.subr.mxu0 0.0
    %1702 = vmatpush2.msra.mxu0 0.0
    %1703 = vmatprep.subr.mxu0 0.0
    %1704 = vmatpush2.msra.mxu0 0.0
    %1705 = vmatprep.subr.mxu0 0.0
    %1706 = vmatpush2.msra.mxu0 0.0
    %1707 = vmatprep.subr.mxu0 0.0
    %1708 = vmatpush2.msra.mxu0 0.0
    %1709 = vmatprep.subr.mxu0 0.0
    %1710 = vmatpush2.msra.mxu0 0.0
    %1711 = vmatprep.subr.mxu0 0.0
    %1712 = vmatpush2.msra.mxu0 0.0
    %1713 = vmatprep.subr.mxu0 0.0
    %1714 = vmatpush2.msra.mxu0 0.0
    %1715 = vmatprep.subr.mxu0 0.0
    %1716 = vmatpush2.msra.mxu0 0.0
    %1717 = vmatprep.subr.mxu0 0.0
    %1718 = vmatpush2.msra.mxu0 0.0
    %1719 = vmatprep.mubr.f32.mxu0 0.0
    %1720 = vmatmul.mubr.f32.gmra.mxu0 %v1653
    %v1721 = vpop.f32.mrf.mxu0
    %v1722 = vadd.f32 0.0, %v1721
    %v1723 = vpop.f32.mrf.mxu0
    %1724 = vdwg.mxu0
    %v1725 = vld [vmem:[#allocation11 + $0x8] sm:$0xff]
    %v1727 = vsel %vm413, %v1722, 0
    %1729 = vmatprep.subr.mxu0 0.0
    %1730 = vmatpush1.msra.mxu0 0.0
    %1731 = vmatprep.subr.mxu0 0.0
    %1732 = vmatpush1.msra.mxu0 0.0
    %1733 = vmatprep.subr.mxu0 0.0
    %1734 = vmatpush1.msra.mxu0 0.0
    %1735 = vmatprep.subr.mxu0 0.0
    %1736 = vmatpush1.msra.mxu0 0.0
    %1737 = vmatprep.subr.mxu0 0.0
    %1738 = vmatpush1.msra.mxu0 0.0
    %1739 = vmatprep.subr.mxu0 0.0
    %1740 = vmatpush1.msra.mxu0 0.0
    %1741 = vmatprep.subr.mxu0 0.0
    %1742 = vmatpush1.msra.mxu0 0.0
    %1743 = vmatprep.subr.mxu0 0.0
    %1744 = vmatpush1.msra.mxu0 0.0
    %1745 = vmatprep.subr.mxu0 0.0
    %1746 = vmatpush1.msra.mxu0 0.0
    %1747 = vmatprep.subr.mxu0 0.0
    %1748 = vmatpush1.msra.mxu0 0.0
    %1749 = vmatprep.subr.mxu0 0.0
    %1750 = vmatpush1.msra.mxu0 0.0
    %1751 = vmatprep.subr.mxu0 0.0
    %1752 = vmatpush1.msra.mxu0 0.0
    %1753 = vmatprep.subr.mxu0 0.0
    %1754 = vmatpush1.msra.mxu0 0.0
    %1755 = vmatprep.subr.mxu0 0.0
    %1756 = vmatpush1.msra.mxu0 0.0
    %1757 = vmatprep.subr.mxu0 0.0
    %1758 = vmatpush1.msra.mxu0 0.0
    %1759 = vmatprep.subr.mxu0 0.0
    %1760 = vmatpush1.msra.mxu0 %v1725
    %1761 = vmatprep.subr.mxu0 0.0
    %1762 = vmatpush2.msra.mxu0 0.0
    %1763 = vmatprep.subr.mxu0 0.0
    %1764 = vmatpush2.msra.mxu0 0.0
    %1765 = vmatprep.subr.mxu0 0.0
    %1766 = vmatpush2.msra.mxu0 0.0
    %1767 = vmatprep.subr.mxu0 0.0
    %1768 = vmatpush2.msra.mxu0 0.0
    %1769 = vmatprep.subr.mxu0 0.0
    %1770 = vmatpush2.msra.mxu0 0.0
    %1771 = vmatprep.subr.mxu0 0.0
    %1772 = vmatpush2.msra.mxu0 0.0
    %1773 = vmatprep.subr.mxu0 0.0
    %1774 = vmatpush2.msra.mxu0 0.0
    %1775 = vmatprep.subr.mxu0 0.0
    %1776 = vmatpush2.msra.mxu0 0.0
    %1777 = vmatprep.subr.mxu0 0.0
    %1778 = vmatpush2.msra.mxu0 0.0
    %1779 = vmatprep.subr.mxu0 0.0
    %1780 = vmatpush2.msra.mxu0 0.0
    %1781 = vmatprep.subr.mxu0 0.0
    %1782 = vmatpush2.msra.mxu0 0.0
    %1783 = vmatprep.subr.mxu0 0.0
    %1784 = vmatpush2.msra.mxu0 0.0
    %1785 = vmatprep.subr.mxu0 0.0
    %1786 = vmatpush2.msra.mxu0 0.0
    %1787 = vmatprep.subr.mxu0 0.0
    %1788 = vmatpush2.msra.mxu0 0.0
    %1789 = vmatprep.subr.mxu0 0.0
    %1790 = vmatpush2.msra.mxu0 0.0
    %1791 = vmatprep.subr.mxu0 0.0
    %1792 = vmatpush2.msra.mxu0 0.0
    %1793 = vmatprep.mubr.f32.mxu0 0.0
    %1794 = vmatmul.mubr.f32.gmra.mxu0 %v1727
    %v1795 = vpop.f32.mrf.mxu0
    %v1796 = vadd.f32 0.0, %v1795
    %v1797 = vpop.f32.mrf.mxu0
    %1798 = vdwg.mxu0
    %v1800 = vsel %vm413, %v1553, 0
    %1802 = vmatprep.subr.mxu0 0.0
    %1803 = vmatpush1.msra.mxu0 0.0
    %1804 = vmatprep.subr.mxu0 0.0
    %1805 = vmatpush1.msra.mxu0 0.0
    %1806 = vmatprep.subr.mxu0 0.0
    %1807 = vmatpush1.msra.mxu0 0.0
    %1808 = vmatprep.subr.mxu0 0.0
    %1809 = vmatpush1.msra.mxu0 0.0
    %1810 = vmatprep.subr.mxu0 0.0
    %1811 = vmatpush1.msra.mxu0 0.0
    %1812 = vmatprep.subr.mxu0 0.0
    %1813 = vmatpush1.msra.mxu0 0.0
    %1814 = vmatprep.subr.mxu0 0.0
    %1815 = vmatpush1.msra.mxu0 0.0
    %1816 = vmatprep.subr.mxu0 0.0
    %1817 = vmatpush1.msra.mxu0 0.0
    %1818 = vmatprep.subr.mxu0 0.0
    %1819 = vmatpush1.msra.mxu0 0.0
    %1820 = vmatprep.subr.mxu0 0.0
    %1821 = vmatpush1.msra.mxu0 0.0
    %1822 = vmatprep.subr.mxu0 0.0
    %1823 = vmatpush1.msra.mxu0 0.0
    %1824 = vmatprep.subr.mxu0 0.0
    %1825 = vmatpush1.msra.mxu0 0.0
    %1826 = vmatprep.subr.mxu0 0.0
    %1827 = vmatpush1.msra.mxu0 0.0
    %1828 = vmatprep.subr.mxu0 0.0
    %1829 = vmatpush1.msra.mxu0 0.0
    %1830 = vmatprep.subr.mxu0 0.0
    %1831 = vmatpush1.msra.mxu0 0.0
    %1832 = vmatprep.subr.mxu0 0.0
    %1833 = vmatpush1.msra.mxu0 %v1556
    %1834 = vmatprep.subr.mxu0 0.0
    %1835 = vmatpush2.msra.mxu0 0.0
    %1836 = vmatprep.subr.mxu0 0.0
    %1837 = vmatpush2.msra.mxu0 0.0
    %1838 = vmatprep.subr.mxu0 0.0
    %1839 = vmatpush2.msra.mxu0 0.0
    %1840 = vmatprep.subr.mxu0 0.0
    %1841 = vmatpush2.msra.mxu0 0.0
    %1842 = vmatprep.subr.mxu0 0.0
    %1843 = vmatpush2.msra.mxu0 0.0
    %1844 = vmatprep.subr.mxu0 0.0
    %1845 = vmatpush2.msra.mxu0 0.0
    %1846 = vmatprep.subr.mxu0 0.0
    %1847 = vmatpush2.msra.mxu0 0.0
    %1848 = vmatprep.subr.mxu0 0.0
    %1849 = vmatpush2.msra.mxu0 0.0
    %1850 = vmatprep.subr.mxu0 0.0
    %1851 = vmatpush2.msra.mxu0 0.0
    %1852 = vmatprep.subr.mxu0 0.0
    %1853 = vmatpush2.msra.mxu0 0.0
    %1854 = vmatprep.subr.mxu0 0.0
    %1855 = vmatpush2.msra.mxu0 0.0
    %1856 = vmatprep.subr.mxu0 0.0
    %1857 = vmatpush2.msra.mxu0 0.0
    %1858 = vmatprep.subr.mxu0 0.0
    %1859 = vmatpush2.msra.mxu0 0.0
    %1860 = vmatprep.subr.mxu0 0.0
    %1861 = vmatpush2.msra.mxu0 0.0
    %1862 = vmatprep.subr.mxu0 0.0
    %1863 = vmatpush2.msra.mxu0 0.0
    %1864 = vmatprep.subr.mxu0 0.0
    %1865 = vmatpush2.msra.mxu0 0.0
    %1866 = vmatprep.mubr.f32.mxu0 0.0
    %1867 = vmatmul.mubr.f32.gmra.mxu0 %v1800
    %v1868 = vpop.f32.mrf.mxu0
    %v1869 = vadd.f32 %v1796, %v1868
    %v1870 = vpop.f32.mrf.mxu0
    %1871 = vdwg.mxu0
    %1872 = vrot.lane.b32.xlu0 %v224, 112
    %v1873 = vpop.permute.xlu0 %1872
    %1874 = vrot.lane.b32.xlu0 %v316, 112
    %v1875 = vpop.permute.xlu0 %1874
    %v1876 = vsel %vm413, %v1873, 0
    %v1878 = vsel %vm413, %v1875, 0
    %1880 = vmatprep.subr.mxu0 0.0
    %1881 = vmatpush1.xpose.msra.mxu0 0.0
    %1882 = vmatprep.subr.mxu0 0.0
    %1883 = vmatpush1.xpose.msra.mxu0 0.0
    %1884 = vmatprep.subr.mxu0 0.0
    %1885 = vmatpush1.xpose.msra.mxu0 0.0
    %1886 = vmatprep.subr.mxu0 0.0
    %1887 = vmatpush1.xpose.msra.mxu0 0.0
    %1888 = vmatprep.subr.mxu0 0.0
    %1889 = vmatpush1.xpose.msra.mxu0 0.0
    %1890 = vmatprep.subr.mxu0 0.0
    %1891 = vmatpush1.xpose.msra.mxu0 0.0
    %1892 = vmatprep.subr.mxu0 0.0
    %1893 = vmatpush1.xpose.msra.mxu0 0.0
    %1894 = vmatprep.subr.mxu0 0.0
    %1895 = vmatpush1.xpose.msra.mxu0 0.0
    %1896 = vmatprep.subr.mxu0 0.0
    %1897 = vmatpush1.xpose.msra.mxu0 0.0
    %1898 = vmatprep.subr.mxu0 0.0
    %1899 = vmatpush1.xpose.msra.mxu0 0.0
    %1900 = vmatprep.subr.mxu0 0.0
    %1901 = vmatpush1.xpose.msra.mxu0 0.0
    %1902 = vmatprep.subr.mxu0 0.0
    %1903 = vmatpush1.xpose.msra.mxu0 0.0
    %1904 = vmatprep.subr.mxu0 0.0
    %1905 = vmatpush1.xpose.msra.mxu0 0.0
    %1906 = vmatprep.subr.mxu0 0.0
    %1907 = vmatpush1.xpose.msra.mxu0 0.0
    %1908 = vmatprep.subr.mxu0 0.0
    %1909 = vmatpush1.xpose.msra.mxu0 0.0
    %1910 = vmatprep.subr.mxu0 0.0
    %1911 = vmatpush1.xpose.msra.mxu0 %v1878
    %1912 = vmatprep.subr.mxu0 0.0
    %1913 = vmatpush2.xpose.msra.mxu0 0.0
    %1914 = vmatprep.subr.mxu0 0.0
    %1915 = vmatpush2.xpose.msra.mxu0 0.0
    %1916 = vmatprep.subr.mxu0 0.0
    %1917 = vmatpush2.xpose.msra.mxu0 0.0
    %1918 = vmatprep.subr.mxu0 0.0
    %1919 = vmatpush2.xpose.msra.mxu0 0.0
    %1920 = vmatprep.subr.mxu0 0.0
    %1921 = vmatpush2.xpose.msra.mxu0 0.0
    %1922 = vmatprep.subr.mxu0 0.0
    %1923 = vmatpush2.xpose.msra.mxu0 0.0
    %1924 = vmatprep.subr.mxu0 0.0
    %1925 = vmatpush2.xpose.msra.mxu0 0.0
    %1926 = vmatprep.subr.mxu0 0.0
    %1927 = vmatpush2.xpose.msra.mxu0 0.0
    %1928 = vmatprep.subr.mxu0 0.0
    %1929 = vmatpush2.xpose.msra.mxu0 0.0
    %1930 = vmatprep.subr.mxu0 0.0
    %1931 = vmatpush2.xpose.msra.mxu0 0.0
    %1932 = vmatprep.subr.mxu0 0.0
    %1933 = vmatpush2.xpose.msra.mxu0 0.0
    %1934 = vmatprep.subr.mxu0 0.0
    %1935 = vmatpush2.xpose.msra.mxu0 0.0
    %1936 = vmatprep.subr.mxu0 0.0
    %1937 = vmatpush2.xpose.msra.mxu0 0.0
    %1938 = vmatprep.subr.mxu0 0.0
    %1939 = vmatpush2.xpose.msra.mxu0 0.0
    %1940 = vmatprep.subr.mxu0 0.0
    %1941 = vmatpush2.xpose.msra.mxu0 0.0
    %1942 = vmatprep.subr.mxu0 0.0
    %1943 = vmatpush2.xpose.msra.mxu0 0.0
    %1944 = vmatprep.mubr.f32.mxu0 0.0
    %1945 = vmatmul.mubr.f32.gmra.mxu0 %v1876
    %v1946 = vpop.f32.mrf.mxu0
    %v1947 = vadd.f32 0.0, %v1946
    %v1948 = vpop.f32.mrf.mxu0
    %1949 = vdwg.mxu0
    %v1950 = vmul.f32 %v1947, 0.35355338
    %v1951 = vsel %vm1393, %v1950, -10000.0
    %v1952 = vsel %vm413, %v1951, -inf
    %1953 = vmax.xlane.f32.xlu0 %v1952
    %v1954 = vpop.xlane.xlu0 %1953
    %v1955 = vsub.f32 %v1951, %v1954
    %v1956 = vmul.f32 %v1955, 1.442695
    %v1957 = vpow.pop %v1956
    %v1958 = vsel %vm413, %v1957, 0.0
    %1959 = vadd.xlane.f32.xlu0 %v1958
    %v1960 = vpop.xlane.xlu0 %1959
    %v1961 = vrcp.pop %v1960
    %v1962 = vmul.f32 %v1957, %v1961
    %1963 = vrot.lane.b32.xlu0 %v402, 112
    %v1964 = vpop.permute.xlu0 %1963
    %v1967 = vsel %vm413, %v1962, 0
    %1969 = vmatprep.subr.mxu0 0.0
    %1970 = vmatpush1.msra.mxu0 0.0
    %1971 = vmatprep.subr.mxu0 0.0
    %1972 = vmatpush1.msra.mxu0 0.0
    %1973 = vmatprep.subr.mxu0 0.0
    %1974 = vmatpush1.msra.mxu0 0.0
    %1975 = vmatprep.subr.mxu0 0.0
    %1976 = vmatpush1.msra.mxu0 0.0
    %1977 = vmatprep.subr.mxu0 0.0
    %1978 = vmatpush1.msra.mxu0 0.0
    %1979 = vmatprep.subr.mxu0 0.0
    %1980 = vmatpush1.msra.mxu0 0.0
    %1981 = vmatprep.subr.mxu0 0.0
    %1982 = vmatpush1.msra.mxu0 0.0
    %1983 = vmatprep.subr.mxu0 0.0
    %1984 = vmatpush1.msra.mxu0 0.0
    %1985 = vmatprep.subr.mxu0 0.0
    %1986 = vmatpush1.msra.mxu0 0.0
    %1987 = vmatprep.subr.mxu0 0.0
    %1988 = vmatpush1.msra.mxu0 0.0
    %1989 = vmatprep.subr.mxu0 0.0
    %1990 = vmatpush1.msra.mxu0 0.0
    %1991 = vmatprep.subr.mxu0 0.0
    %1992 = vmatpush1.msra.mxu0 0.0
    %1993 = vmatprep.subr.mxu0 0.0
    %1994 = vmatpush1.msra.mxu0 0.0
    %1995 = vmatprep.subr.mxu0 0.0
    %1996 = vmatpush1.msra.mxu0 0.0
    %1997 = vmatprep.subr.mxu0 0.0
    %1998 = vmatpush1.msra.mxu0 0.0
    %1999 = vmatprep.subr.mxu0 0.0
    %2000 = vmatpush1.msra.mxu0 %v1964
    %2001 = vmatprep.subr.mxu0 0.0
    %2002 = vmatpush2.msra.mxu0 0.0
    %2003 = vmatprep.subr.mxu0 0.0
    %2004 = vmatpush2.msra.mxu0 0.0
    %2005 = vmatprep.subr.mxu0 0.0
    %2006 = vmatpush2.msra.mxu0 0.0
    %2007 = vmatprep.subr.mxu0 0.0
    %2008 = vmatpush2.msra.mxu0 0.0
    %2009 = vmatprep.subr.mxu0 0.0
    %2010 = vmatpush2.msra.mxu0 0.0
    %2011 = vmatprep.subr.mxu0 0.0
    %2012 = vmatpush2.msra.mxu0 0.0
    %2013 = vmatprep.subr.mxu0 0.0
    %2014 = vmatpush2.msra.mxu0 0.0
    %2015 = vmatprep.subr.mxu0 0.0
    %2016 = vmatpush2.msra.mxu0 0.0
    %2017 = vmatprep.subr.mxu0 0.0
    %2018 = vmatpush2.msra.mxu0 0.0
    %2019 = vmatprep.subr.mxu0 0.0
    %2020 = vmatpush2.msra.mxu0 0.0
    %2021 = vmatprep.subr.mxu0 0.0
    %2022 = vmatpush2.msra.mxu0 0.0
    %2023 = vmatprep.subr.mxu0 0.0
    %2024 = vmatpush2.msra.mxu0 0.0
    %2025 = vmatprep.subr.mxu0 0.0
    %2026 = vmatpush2.msra.mxu0 0.0
    %2027 = vmatprep.subr.mxu0 0.0
    %2028 = vmatpush2.msra.mxu0 0.0
    %2029 = vmatprep.subr.mxu0 0.0
    %2030 = vmatpush2.msra.mxu0 0.0
    %2031 = vmatprep.subr.mxu0 0.0
    %2032 = vmatpush2.msra.mxu0 0.0
    %2033 = vmatprep.mubr.f32.mxu0 0.0
    %2034 = vmatmul.mubr.f32.gmra.mxu0 %v1967
    %v2035 = vpop.f32.mrf.mxu0
    %v2036 = vadd.f32 0.0, %v2035
    %v2037 = vpop.f32.mrf.mxu0
    %2038 = vdwg.mxu0
    %v2039 = vld [vmem:[#allocation11 + $0x10] sm:$0xff]
    %v2041 = vsel %vm413, %v2036, 0
    %2043 = vmatprep.subr.mxu0 0.0
    %2044 = vmatpush1.msra.mxu0 0.0
    %2045 = vmatprep.subr.mxu0 0.0
    %2046 = vmatpush1.msra.mxu0 0.0
    %2047 = vmatprep.subr.mxu0 0.0
    %2048 = vmatpush1.msra.mxu0 0.0
    %2049 = vmatprep.subr.mxu0 0.0
    %2050 = vmatpush1.msra.mxu0 0.0
    %2051 = vmatprep.subr.mxu0 0.0
    %2052 = vmatpush1.msra.mxu0 0.0
    %2053 = vmatprep.subr.mxu0 0.0
    %2054 = vmatpush1.msra.mxu0 0.0
    %2055 = vmatprep.subr.mxu0 0.0
    %2056 = vmatpush1.msra.mxu0 0.0
    %2057 = vmatprep.subr.mxu0 0.0
    %2058 = vmatpush1.msra.mxu0 0.0
    %2059 = vmatprep.subr.mxu0 0.0
    %2060 = vmatpush1.msra.mxu0 0.0
    %2061 = vmatprep.subr.mxu0 0.0
    %2062 = vmatpush1.msra.mxu0 0.0
    %2063 = vmatprep.subr.mxu0 0.0
    %2064 = vmatpush1.msra.mxu0 0.0
    %2065 = vmatprep.subr.mxu0 0.0
    %2066 = vmatpush1.msra.mxu0 0.0
    %2067 = vmatprep.subr.mxu0 0.0
    %2068 = vmatpush1.msra.mxu0 0.0
    %2069 = vmatprep.subr.mxu0 0.0
    %2070 = vmatpush1.msra.mxu0 0.0
    %2071 = vmatprep.subr.mxu0 0.0
    %2072 = vmatpush1.msra.mxu0 0.0
    %2073 = vmatprep.subr.mxu0 0.0
    %2074 = vmatpush1.msra.mxu0 %v2039
    %2075 = vmatprep.subr.mxu0 0.0
    %2076 = vmatpush2.msra.mxu0 0.0
    %2077 = vmatprep.subr.mxu0 0.0
    %2078 = vmatpush2.msra.mxu0 0.0
    %2079 = vmatprep.subr.mxu0 0.0
    %2080 = vmatpush2.msra.mxu0 0.0
    %2081 = vmatprep.subr.mxu0 0.0
    %2082 = vmatpush2.msra.mxu0 0.0
    %2083 = vmatprep.subr.mxu0 0.0
    %2084 = vmatpush2.msra.mxu0 0.0
    %2085 = vmatprep.subr.mxu0 0.0
    %2086 = vmatpush2.msra.mxu0 0.0
    %2087 = vmatprep.subr.mxu0 0.0
    %2088 = vmatpush2.msra.mxu0 0.0
    %2089 = vmatprep.subr.mxu0 0.0
    %2090 = vmatpush2.msra.mxu0 0.0
    %2091 = vmatprep.subr.mxu0 0.0
    %2092 = vmatpush2.msra.mxu0 0.0
    %2093 = vmatprep.subr.mxu0 0.0
    %2094 = vmatpush2.msra.mxu0 0.0
    %2095 = vmatprep.subr.mxu0 0.0
    %2096 = vmatpush2.msra.mxu0 0.0
    %2097 = vmatprep.subr.mxu0 0.0
    %2098 = vmatpush2.msra.mxu0 0.0
    %2099 = vmatprep.subr.mxu0 0.0
    %2100 = vmatpush2.msra.mxu0 0.0
    %2101 = vmatprep.subr.mxu0 0.0
    %2102 = vmatpush2.msra.mxu0 0.0
    %2103 = vmatprep.subr.mxu0 0.0
    %2104 = vmatpush2.msra.mxu0 0.0
    %2105 = vmatprep.subr.mxu0 0.0
    %2106 = vmatpush2.msra.mxu0 0.0
    %2107 = vmatprep.mubr.f32.mxu0 0.0
    %2108 = vmatmul.mubr.f32.gmra.mxu0 %v2041
    %v2109 = vpop.f32.mrf.mxu0
    %v2110 = vadd.f32 0.0, %v2109
    %v2111 = vpop.f32.mrf.mxu0
    %2112 = vdwg.mxu0
    %v2113 = vadd.f32 %v1869, %v2110
    %2114 = vrot.lane.b32.xlu0 %v224, 104
    %v2115 = vpop.permute.xlu0 %2114
    %2116 = vrot.lane.b32.xlu0 %v316, 104
    %v2117 = vpop.permute.xlu0 %2116
    %v2118 = vsel %vm413, %v2115, 0
    %v2120 = vsel %vm413, %v2117, 0
    %2122 = vmatprep.subr.mxu0 0.0
    %2123 = vmatpush1.xpose.msra.mxu0 0.0
    %2124 = vmatprep.subr.mxu0 0.0
    %2125 = vmatpush1.xpose.msra.mxu0 0.0
    %2126 = vmatprep.subr.mxu0 0.0
    %2127 = vmatpush1.xpose.msra.mxu0 0.0
    %2128 = vmatprep.subr.mxu0 0.0
    %2129 = vmatpush1.xpose.msra.mxu0 0.0
    %2130 = vmatprep.subr.mxu0 0.0
    %2131 = vmatpush1.xpose.msra.mxu0 0.0
    %2132 = vmatprep.subr.mxu0 0.0
    %2133 = vmatpush1.xpose.msra.mxu0 0.0
    %2134 = vmatprep.subr.mxu0 0.0
    %2135 = vmatpush1.xpose.msra.mxu0 0.0
    %2136 = vmatprep.subr.mxu0 0.0
    %2137 = vmatpush1.xpose.msra.mxu0 0.0
    %2138 = vmatprep.subr.mxu0 0.0
    %2139 = vmatpush1.xpose.msra.mxu0 0.0
    %2140 = vmatprep.subr.mxu0 0.0
    %2141 = vmatpush1.xpose.msra.mxu0 0.0
    %2142 = vmatprep.subr.mxu0 0.0
    %2143 = vmatpush1.xpose.msra.mxu0 0.0
    %2144 = vmatprep.subr.mxu0 0.0
    %2145 = vmatpush1.xpose.msra.mxu0 0.0
    %2146 = vmatprep.subr.mxu0 0.0
    %2147 = vmatpush1.xpose.msra.mxu0 0.0
    %2148 = vmatprep.subr.mxu0 0.0
    %2149 = vmatpush1.xpose.msra.mxu0 0.0
    %2150 = vmatprep.subr.mxu0 0.0
    %2151 = vmatpush1.xpose.msra.mxu0 0.0
    %2152 = vmatprep.subr.mxu0 0.0
    %2153 = vmatpush1.xpose.msra.mxu0 %v2120
    %2154 = vmatprep.subr.mxu0 0.0
    %2155 = vmatpush2.xpose.msra.mxu0 0.0
    %2156 = vmatprep.subr.mxu0 0.0
    %2157 = vmatpush2.xpose.msra.mxu0 0.0
    %2158 = vmatprep.subr.mxu0 0.0
    %2159 = vmatpush2.xpose.msra.mxu0 0.0
    %2160 = vmatprep.subr.mxu0 0.0
    %2161 = vmatpush2.xpose.msra.mxu0 0.0
    %2162 = vmatprep.subr.mxu0 0.0
    %2163 = vmatpush2.xpose.msra.mxu0 0.0
    %2164 = vmatprep.subr.mxu0 0.0
    %2165 = vmatpush2.xpose.msra.mxu0 0.0
    %2166 = vmatprep.subr.mxu0 0.0
    %2167 = vmatpush2.xpose.msra.mxu0 0.0
    %2168 = vmatprep.subr.mxu0 0.0
    %2169 = vmatpush2.xpose.msra.mxu0 0.0
    %2170 = vmatprep.subr.mxu0 0.0
    %2171 = vmatpush2.xpose.msra.mxu0 0.0
    %2172 = vmatprep.subr.mxu0 0.0
    %2173 = vmatpush2.xpose.msra.mxu0 0.0
    %2174 = vmatprep.subr.mxu0 0.0
    %2175 = vmatpush2.xpose.msra.mxu0 0.0
    %2176 = vmatprep.subr.mxu0 0.0
    %2177 = vmatpush2.xpose.msra.mxu0 0.0
    %2178 = vmatprep.subr.mxu0 0.0
    %2179 = vmatpush2.xpose.msra.mxu0 0.0
    %2180 = vmatprep.subr.mxu0 0.0
    %2181 = vmatpush2.xpose.msra.mxu0 0.0
    %2182 = vmatprep.subr.mxu0 0.0
    %2183 = vmatpush2.xpose.msra.mxu0 0.0
    %2184 = vmatprep.subr.mxu0 0.0
    %2185 = vmatpush2.xpose.msra.mxu0 0.0
    %2186 = vmatprep.mubr.f32.mxu0 0.0
    %2187 = vmatmul.mubr.f32.gmra.mxu0 %v2118
    %v2188 = vpop.f32.mrf.mxu0
    %v2189 = vadd.f32 0.0, %v2188
    %v2190 = vpop.f32.mrf.mxu0
    %2191 = vdwg.mxu0
    %v2192 = vmul.f32 %v2189, 0.35355338
    %v2193 = vsel %vm1393, %v2192, -10000.0
    %v2194 = vsel %vm413, %v2193, -inf
    %2195 = vmax.xlane.f32.xlu0 %v2194
    %v2196 = vpop.xlane.xlu0 %2195
    %v2197 = vsub.f32 %v2193, %v2196
    %v2198 = vmul.f32 %v2197, 1.442695
    %v2199 = vpow.pop %v2198
    %v2200 = vsel %vm413, %v2199, 0.0
    %2201 = vadd.xlane.f32.xlu0 %v2200
    %v2202 = vpop.xlane.xlu0 %2201
    %v2203 = vrcp.pop %v2202
    %v2204 = vmul.f32 %v2199, %v2203
    %2205 = vrot.lane.b32.xlu0 %v402, 104
    %v2206 = vpop.permute.xlu0 %2205
    %v2209 = vsel %vm413, %v2204, 0
    %2211 = vmatprep.subr.mxu0 0.0
    %2212 = vmatpush1.msra.mxu0 0.0
    %2213 = vmatprep.subr.mxu0 0.0
    %2214 = vmatpush1.msra.mxu0 0.0
    %2215 = vmatprep.subr.mxu0 0.0
    %2216 = vmatpush1.msra.mxu0 0.0
    %2217 = vmatprep.subr.mxu0 0.0
    %2218 = vmatpush1.msra.mxu0 0.0
    %2219 = vmatprep.subr.mxu0 0.0
    %2220 = vmatpush1.msra.mxu0 0.0
    %2221 = vmatprep.subr.mxu0 0.0
    %2222 = vmatpush1.msra.mxu0 0.0
    %2223 = vmatprep.subr.mxu0 0.0
    %2224 = vmatpush1.msra.mxu0 0.0
    %2225 = vmatprep.subr.mxu0 0.0
    %2226 = vmatpush1.msra.mxu0 0.0
    %2227 = vmatprep.subr.mxu0 0.0
    %2228 = vmatpush1.msra.mxu0 0.0
    %2229 = vmatprep.subr.mxu0 0.0
    %2230 = vmatpush1.msra.mxu0 0.0
    %2231 = vmatprep.subr.mxu0 0.0
    %2232 = vmatpush1.msra.mxu0 0.0
    %2233 = vmatprep.subr.mxu0 0.0
    %2234 = vmatpush1.msra.mxu0 0.0
    %2235 = vmatprep.subr.mxu0 0.0
    %2236 = vmatpush1.msra.mxu0 0.0
    %2237 = vmatprep.subr.mxu0 0.0
    %2238 = vmatpush1.msra.mxu0 0.0
    %2239 = vmatprep.subr.mxu0 0.0
    %2240 = vmatpush1.msra.mxu0 0.0
    %2241 = vmatprep.subr.mxu0 0.0
    %2242 = vmatpush1.msra.mxu0 %v2206
    %2243 = vmatprep.subr.mxu0 0.0
    %2244 = vmatpush2.msra.mxu0 0.0
    %2245 = vmatprep.subr.mxu0 0.0
    %2246 = vmatpush2.msra.mxu0 0.0
    %2247 = vmatprep.subr.mxu0 0.0
    %2248 = vmatpush2.msra.mxu0 0.0
    %2249 = vmatprep.subr.mxu0 0.0
    %2250 = vmatpush2.msra.mxu0 0.0
    %2251 = vmatprep.subr.mxu0 0.0
    %2252 = vmatpush2.msra.mxu0 0.0
    %2253 = vmatprep.subr.mxu0 0.0
    %2254 = vmatpush2.msra.mxu0 0.0
    %2255 = vmatprep.subr.mxu0 0.0
    %2256 = vmatpush2.msra.mxu0 0.0
    %2257 = vmatprep.subr.mxu0 0.0
    %2258 = vmatpush2.msra.mxu0 0.0
    %2259 = vmatprep.subr.mxu0 0.0
    %2260 = vmatpush2.msra.mxu0 0.0
    %2261 = vmatprep.subr.mxu0 0.0
    %2262 = vmatpush2.msra.mxu0 0.0
    %2263 = vmatprep.subr.mxu0 0.0
    %2264 = vmatpush2.msra.mxu0 0.0
    %2265 = vmatprep.subr.mxu0 0.0
    %2266 = vmatpush2.msra.mxu0 0.0
    %2267 = vmatprep.subr.mxu0 0.0
    %2268 = vmatpush2.msra.mxu0 0.0
    %2269 = vmatprep.subr.mxu0 0.0
    %2270 = vmatpush2.msra.mxu0 0.0
    %2271 = vmatprep.subr.mxu0 0.0
    %2272 = vmatpush2.msra.mxu0 0.0
    %2273 = vmatprep.subr.mxu0 0.0
    %2274 = vmatpush2.msra.mxu0 0.0
    %2275 = vmatprep.mubr.f32.mxu0 0.0
    %2276 = vmatmul.mubr.f32.gmra.mxu0 %v2209
    %v2277 = vpop.f32.mrf.mxu0
    %v2278 = vadd.f32 0.0, %v2277
    %v2279 = vpop.f32.mrf.mxu0
    %2280 = vdwg.mxu0
    %v2281 = vld [vmem:[#allocation11 + $0x18] sm:$0xff]
    %v2283 = vsel %vm413, %v2278, 0
    %2285 = vmatprep.subr.mxu0 0.0
    %2286 = vmatpush1.msra.mxu0 0.0
    %2287 = vmatprep.subr.mxu0 0.0
    %2288 = vmatpush1.msra.mxu0 0.0
    %2289 = vmatprep.subr.mxu0 0.0
    %2290 = vmatpush1.msra.mxu0 0.0
    %2291 = vmatprep.subr.mxu0 0.0
    %2292 = vmatpush1.msra.mxu0 0.0
    %2293 = vmatprep.subr.mxu0 0.0
    %2294 = vmatpush1.msra.mxu0 0.0
    %2295 = vmatprep.subr.mxu0 0.0
    %2296 = vmatpush1.msra.mxu0 0.0
    %2297 = vmatprep.subr.mxu0 0.0
    %2298 = vmatpush1.msra.mxu0 0.0
    %2299 = vmatprep.subr.mxu0 0.0
    %2300 = vmatpush1.msra.mxu0 0.0
    %2301 = vmatprep.subr.mxu0 0.0
    %2302 = vmatpush1.msra.mxu0 0.0
    %2303 = vmatprep.subr.mxu0 0.0
    %2304 = vmatpush1.msra.mxu0 0.0
    %2305 = vmatprep.subr.mxu0 0.0
    %2306 = vmatpush1.msra.mxu0 0.0
    %2307 = vmatprep.subr.mxu0 0.0
    %2308 = vmatpush1.msra.mxu0 0.0
    %2309 = vmatprep.subr.mxu0 0.0
    %2310 = vmatpush1.msra.mxu0 0.0
    %2311 = vmatprep.subr.mxu0 0.0
    %2312 = vmatpush1.msra.mxu0 0.0
    %2313 = vmatprep.subr.mxu0 0.0
    %2314 = vmatpush1.msra.mxu0 0.0
    %2315 = vmatprep.subr.mxu0 0.0
    %2316 = vmatpush1.msra.mxu0 %v2281
    %2317 = vmatprep.subr.mxu0 0.0
    %2318 = vmatpush2.msra.mxu0 0.0
    %2319 = vmatprep.subr.mxu0 0.0
    %2320 = vmatpush2.msra.mxu0 0.0
    %2321 = vmatprep.subr.mxu0 0.0
    %2322 = vmatpush2.msra.mxu0 0.0
    %2323 = vmatprep.subr.mxu0 0.0
    %2324 = vmatpush2.msra.mxu0 0.0
    %2325 = vmatprep.subr.mxu0 0.0
    %2326 = vmatpush2.msra.mxu0 0.0
    %2327 = vmatprep.subr.mxu0 0.0
    %2328 = vmatpush2.msra.mxu0 0.0
    %2329 = vmatprep.subr.mxu0 0.0
    %2330 = vmatpush2.msra.mxu0 0.0
    %2331 = vmatprep.subr.mxu0 0.0
    %2332 = vmatpush2.msra.mxu0 0.0
    %2333 = vmatprep.subr.mxu0 0.0
    %2334 = vmatpush2.msra.mxu0 0.0
    %2335 = vmatprep.subr.mxu0 0.0
    %2336 = vmatpush2.msra.mxu0 0.0
    %2337 = vmatprep.subr.mxu0 0.0
    %2338 = vmatpush2.msra.mxu0 0.0
    %2339 = vmatprep.subr.mxu0 0.0
    %2340 = vmatpush2.msra.mxu0 0.0
    %2341 = vmatprep.subr.mxu0 0.0
    %2342 = vmatpush2.msra.mxu0 0.0
    %2343 = vmatprep.subr.mxu0 0.0
    %2344 = vmatpush2.msra.mxu0 0.0
    %2345 = vmatprep.subr.mxu0 0.0
    %2346 = vmatpush2.msra.mxu0 0.0
    %2347 = vmatprep.subr.mxu0 0.0
    %2348 = vmatpush2.msra.mxu0 0.0
    %2349 = vmatprep.mubr.f32.mxu0 0.0
    %2350 = vmatmul.mubr.f32.gmra.mxu0 %v2283
    %v2351 = vpop.f32.mrf.mxu0
    %v2352 = vadd.f32 0.0, %v2351
    %v2353 = vpop.f32.mrf.mxu0
    %2354 = vdwg.mxu0
    %v2355 = vadd.f32 %v2113, %v2352
    %v2356 = vld [vmem:[#allocation13] sm:$0x1]
    %v2358 = vlaneseq
    %v2359 = vshrl.u32 %v2358, 7
    %v2360 = vsub.s32 0, %v2359
    %v2361 = vrot.slane %v2356, %v2360
    %v2363 = vadd.f32 %v2355, %v2361
    %2364 = vst.msk [vmem:[#allocation14 + $0x8] sm:$0xff] %vm145, %v2363
    // Predicated region
    $region74: #{cross_attention_forward.1} parent=1 // pred_check
      _
    $region75: #{cross_attention_forward.1} parent=1 // pred_check_branch
      %2366 = sbr.rel (0) target = $region77
    $region76: #{cross_attention_forward.1} parent=1 // pred_region
      %s2368 = ssub.s32 256, 256
      %2369 = vsyncadd [#allocation4], %s2368
      %s2370 = sshll.u32 [#allocation14], 4
      %s2371 = int_to_ptr.vmem [resolvable:$true] %s2370
      %2376 = dma.vmem_to_hbm [thread:$0]  %s2371, 256, %s11, [#allocation4], 128, 128, 8
    $region77: #{cross_attention_forward.1} parent=1 // pred_fallthru
      _
    // Predicated region
    $region78: #{cross_attention_forward.1} parent=1 // pred_check
      _
    $region79: #{cross_attention_forward.1} parent=1 // pred_check_branch
      %2378 = sbr.rel (0) target = $region81
    $region80: #{cross_attention_forward.1} parent=1 // pred_region
      %2379 = dma.done [#allocation4], 256
    $region81: #{cross_attention_forward.1} parent=1 // pred_fallthru
      _
    %2380 = vsyncpa [#allocation3], 1
    %2381 = vsyncpa [#allocation6], 1
    %2382 = vsyncpa [#allocation9], 1
    %2383 = vsyncpa [#allocation12], 1
    %2384 = vsyncpa [#allocation4], 1

</llo_original>
